<compile_context>
chip_gen: v7x
topology: tpu7x:2x2x1
jax: 0.10.0
libtpu: 0.0.40
codegen_flags: <defaults>
</compile_context>

<pallas_src>
import math
from functools import partial

import jax
import jax.numpy as jnp
from jax.experimental import pallas as pl
from jax.experimental.pallas import tpu as pltpu


# ------------------------------------------------------------------ kernels --

def _layernorm(x, gamma, beta, eps):
    mu = jnp.mean(x, axis=-1, keepdims=True)
    var = jnp.mean((x - mu) ** 2, axis=-1, keepdims=True)
    return (x - mu) * jax.lax.rsqrt(var + eps) * gamma + beta


def _encoder_layer_kernel(x_ref, pe_ref, mask_ref,
                          wqkv_ref, bqkv_ref, wo_ref, bo_ref,
                          g1_ref, be1_ref, w1_ref, bf1_ref,
                          w2_ref, bf2_ref, g2_ref, be2_ref,
                          o_ref, act_ref, *, n_heads, emb_scale, eps):
    """One grid step = (one batch, one encoder layer).

    Grid = (B, n_layers); batch axis "parallel", layer axis "arbitrary".
    The f32 activation lives in `act_ref` (VMEM scratch) across the layer axis;
    it is initialized from x*sqrt(D)+PE at layer 0 and the bf16 output block is
    written only at the last layer.  Per-layer weights arrive as (1, ., .) blocks
    selected by the layer index (streamed + double-buffered by Pallas).
    """
    li = pl.program_id(1)
    n_layers = pl.num_programs(1)
    S, D = act_ref.shape
    hd = D // n_heads

    @pl.when(li == 0)
    def _():
        # embedding scale + positional encoding fused into the layer stack
        act_ref[...] = x_ref[0] * emb_scale + pe_ref[...]

    xr = act_ref[...]                       # (S, D) f32, resident across layers
    mask_add = mask_ref[...]                # (S, S) additive causal mask (f32)

    # ---- fused lane-dense QKV projection: one (S, D) @ (D, 3D) matmul ----
    qkv = jnp.dot(xr.astype(jnp.bfloat16), wqkv_ref[0],
                  preferred_element_type=jnp.float32) + bqkv_ref[0]
    # fold the attention scale into q once (instead of scaling (S,S) scores)
    q = qkv[:, :D] * (1.0 / math.sqrt(hd))
    k = qkv[:, D:2 * D].astype(jnp.bfloat16)
    v = qkv[:, 2 * D:]

    # ---- per-head attention; contraction over hd (not D) ----
    # TODO(synk): for long sequences, stream K/V in tiles with an online softmax
    # (flash-style) instead of keeping the (S, S) scores live per head.
    heads = []
    for h in range(n_heads):
        lo, hi = h * hd, (h + 1) * hd
        qh = q[:, lo:hi].astype(jnp.bfloat16)          # (S, hd)
        kh = k[:, lo:hi]                               # (S, hd) bf16
        vh = v[:, lo:hi].astype(jnp.bfloat16)          # (S, hd)
        s = jax.lax.dot_general(qh, kh, (((1,), (1,)), ((), ())),
                                preferred_element_type=jnp.float32)  # (S, S)
        s = s + mask_add
        s = s - jnp.max(s, axis=-1, keepdims=True)
        p = jnp.exp(s)
        p = p * pl.reciprocal(jnp.sum(p, axis=-1, keepdims=True), approx=True)
        heads.append(jnp.dot(p.astype(jnp.bfloat16), vh,
                             preferred_element_type=jnp.float32))    # (S, hd)
    ctx = jnp.concatenate(heads, axis=-1) if n_heads > 1 else heads[0]

    # ---- concat-heads output projection: (S, D) @ (D, D) ----
    attn_out = jnp.dot(ctx.astype(jnp.bfloat16), wo_ref[0],
                       preferred_element_type=jnp.float32) + bo_ref[0]

    # TODO(synk): dropout is identity (eval mode); no RNG-based dropout in kernel.
    y = _layernorm(xr + attn_out, g1_ref[0], be1_ref[0], eps)

    # ---- FFN (relu), lane-dense bf16 matmuls with f32 accumulation ----
    h1 = jnp.maximum(
        jnp.dot(y.astype(jnp.bfloat16), w1_ref[0],
                preferred_element_type=jnp.float32) + bf1_ref[0], 0.0)
    h2 = jnp.dot(h1.astype(jnp.bfloat16), w2_ref[0],
                 preferred_element_type=jnp.float32) + bf2_ref[0]
    out = _layernorm(y + h2, g2_ref[0], be2_ref[0], eps)

    act_ref[...] = out

    @pl.when(li == n_layers - 1)
    def _():
        o_ref[0] = out.astype(o_ref.dtype)


def _decoder_kernel(x_ref, w_ref, b_ref, o_ref):
    # x_ref: (tile_rows, D) bf16, w_ref: (D, tile_v) bf16, b_ref: (1, tile_v) f32
    o_ref[...] = (jnp.dot(x_ref[...], w_ref[...],
                          preferred_element_type=jnp.float32)
                  + b_ref[...]).astype(o_ref.dtype)


# ----------------------------------------------------------------- wrappers --

_STACK_ORDER = ('wqkv', 'bqkv', 'wo', 'bo', 'g1', 'be1',
                'w1', 'bf1', 'w2', 'bf2', 'g2', 'be2')

_VMEM_LIMIT = 48 * 1024 * 1024   # headroom under v7x's 64 MiB physical VMEM


def encoder_stack(x_bsd, pe_sd, mask_add, stack, *, n_layers, n_heads, d_model):
    """x_bsd: (B, S, D) f32, pe_sd: (S, D) f32, mask_add: (S, S) f32.
    Returns (B, S, D) bf16."""
    B, S, D = x_bsd.shape
    F = stack['w1'].shape[2]

    batch_map = lambda b, l: (b, 0, 0)
    const_map = lambda b, l: (0, 0)
    layer_map = lambda b, l: (l, 0, 0)

    weight_specs = [
        pl.BlockSpec((1, D, 3 * D), layer_map),   # wqkv (bf16)
        pl.BlockSpec((1, 1, 3 * D), layer_map),   # bqkv
        pl.BlockSpec((1, D, D), layer_map),       # wo (bf16)
        pl.BlockSpec((1, 1, D), layer_map),       # bo
        pl.BlockSpec((1, 1, D), layer_map),       # g1
        pl.BlockSpec((1, 1, D), layer_map),       # be1
        pl.BlockSpec((1, D, F), layer_map),       # w1 (bf16)
        pl.BlockSpec((1, 1, F), layer_map),       # bf1
        pl.BlockSpec((1, F, D), layer_map),       # w2 (bf16)
        pl.BlockSpec((1, 1, D), layer_map),       # bf2
        pl.BlockSpec((1, 1, D), layer_map),       # g2
        pl.BlockSpec((1, 1, D), layer_map),       # be2
    ]

    args = [stack[k] for k in _STACK_ORDER]
    return pl.pallas_call(
        partial(_encoder_layer_kernel, n_heads=n_heads,
                emb_scale=math.sqrt(d_model), eps=1e-5),
        grid=(B, n_layers),
        in_specs=[pl.BlockSpec((1, S, D), batch_map),   # x (per-batch rows)
                  pl.BlockSpec((S, D), const_map),      # positional encoding
                  pl.BlockSpec((S, S), const_map),      # additive causal mask
                  *weight_specs],
        out_specs=pl.BlockSpec((1, S, D), batch_map),
        out_shape=jax.ShapeDtypeStruct((B, S, D), jnp.bfloat16),
        scratch_shapes=[pltpu.VMEM((S, D), jnp.float32)],
        compiler_params=pltpu.CompilerParams(
            dimension_semantics=("parallel", "arbitrary"),
            vmem_limit_bytes=_VMEM_LIMIT),
    )(x_bsd, pe_sd, mask_add, *args)


def decoder(x_rows, w, b, *, tile_rows=512, tile_v=2048):
    """Tiled linear decoder.  Grid is (vocab, rows) with rows innermost so each
    (D, tile_v) weight slab is DMA'd exactly once; the smaller activation slab
    is the one that gets re-streamed."""
    N, D = x_rows.shape
    V = w.shape[1]
    tr = min(tile_rows, N)
    tv = min(tile_v, V)
    return pl.pallas_call(
        _decoder_kernel,
        grid=(pl.cdiv(V, tv), pl.cdiv(N, tr)),
        in_specs=[pl.BlockSpec((tr, D), lambda c, r: (r, 0)),
                  pl.BlockSpec((D, tv), lambda c, r: (0, c)),
                  pl.BlockSpec((1, tv), lambda c, r: (0, c))],
        out_specs=pl.BlockSpec((tr, tv), lambda c, r: (r, c)),
        out_shape=jax.ShapeDtypeStruct((N, V), jnp.float32),
        compiler_params=pltpu.CompilerParams(
            dimension_semantics=("parallel", "parallel"),
            vmem_limit_bytes=_VMEM_LIMIT),
    )(x_rows, w, b)


# ------------------------------------------------------------------- params --

def init_params(key, vocab_size, d_model, n_heads, dim_ff, n_layers, max_len=5000):
    D, F = d_model, dim_ff
    keys = jax.random.split(key, 2 + n_layers)

    def u(k, shape, bound=0.1):
        return jax.random.uniform(k, shape, jnp.float32, -bound, bound)

    embed = u(keys[0], (vocab_size, D))                  # nn.Embedding weight
    dec_w = u(keys[1], (vocab_size, D))                  # decoder Linear weight
    dec_b = jnp.zeros((vocab_size,), jnp.float32)        # decoder bias .zero_()

    # PositionalEncoding table (max_len, D)
    position = jnp.arange(max_len, dtype=jnp.float32)[:, None]
    div_term = jnp.exp(jnp.arange(0, D, 2, dtype=jnp.float32) *
                       (-math.log(10000.0) / D))
    pe = jnp.zeros((max_len, D), jnp.float32)
    pe = pe.at[:, 0::2].set(jnp.sin(position * div_term))
    pe = pe.at[:, 1::2].set(jnp.cos(position * div_term))

    per_layer = {k: [] for k in _STACK_ORDER}
    for li in range(n_layers):
        lk = jax.random.split(keys[2 + li], 6)
        in_proj_w = u(lk[0], (3 * D, D))                 # MultiheadAttention in_proj
        in_proj_b = u(lk[1], (3 * D,), 0.05)
        out_proj_w = u(lk[2], (D, D))
        out_proj_b = u(lk[3], (D,), 0.05)
        lin1_w = u(lk[4], (F, D))
        lin1_b = jnp.zeros((F,), jnp.float32)
        lin2_w = u(lk[5], (D, F))
        lin2_b = jnp.zeros((D,), jnp.float32)

        # fused, pre-transposed, lane-dense layouts; matmul weights in bf16.
        # NOTE: head h must stay on lanes [h*hd, (h+1)*hd) of the q/k/v columns.
        per_layer['wqkv'].append(in_proj_w.T.astype(jnp.bfloat16))   # (D, 3D)
        per_layer['bqkv'].append(in_proj_b.reshape(1, 3 * D))
        per_layer['wo'].append(out_proj_w.T.astype(jnp.bfloat16))    # (D, D)
        per_layer['bo'].append(out_proj_b.reshape(1, D))
        per_layer['g1'].append(jnp.ones((1, D), jnp.float32))
        per_layer['be1'].append(jnp.zeros((1, D), jnp.float32))
        per_layer['w1'].append(lin1_w.T.astype(jnp.bfloat16))        # (D, F)
        per_layer['bf1'].append(lin1_b.reshape(1, F))
        per_layer['w2'].append(lin2_w.T.astype(jnp.bfloat16))        # (F, D)
        per_layer['bf2'].append(lin2_b.reshape(1, D))
        per_layer['g2'].append(jnp.ones((1, D), jnp.float32))
        per_layer['be2'].append(jnp.zeros((1, D), jnp.float32))

    stack = {k: jnp.stack(v, axis=0) for k, v in per_layer.items()}
    return dict(embed=embed, pe=pe, stack=stack,
                dec_w_t=dec_w.T.astype(jnp.bfloat16),    # (D, V), lane-dense vocab
                dec_b2d=dec_b.reshape(1, vocab_size))


# ------------------------------------------------------------------ forward --

def transformer_forward(params, src, src_mask_bool, *, d_model, n_heads, n_layers):
    """src: (S, B) int32 tokens, src_mask_bool: (S, S) bool (True = masked).
    Returns logits of shape (S, B, vocab_size), matching the PyTorch module."""
    S, B = src.shape
    D = d_model

    # --- XLA glue on tiny tensors: embedding gather + layout + (S,S) mask ---
    emb = params['embed'][src]                                   # (S, B, D) gather
    x_bsd = jnp.transpose(emb, (1, 0, 2))                        # (B, S, D)
    pe_sd = params['pe'][:S]                                     # (S, D)
    mask_add = jnp.where(src_mask_bool, -1e30, 0.0).astype(jnp.float32)  # (S, S)

    # --- fused PE + encoder stack: grid = (batch parallel, layer arbitrary) ---
    h = encoder_stack(x_bsd, pe_sd, mask_add, params['stack'],
                      n_layers=n_layers, n_heads=n_heads, d_model=d_model)

    # s-major bf16 rows -> decoder writes logits directly in (S, B, V) order
    h_sb = jnp.transpose(h, (1, 0, 2)).reshape(S * B, D)         # (S*B, D) bf16
    logits = decoder(h_sb, params['dec_w_t'], params['dec_b2d'])  # (S*B, V) f32
    V = params['dec_w_t'].shape[1]
    return logits.reshape(S, B, V)                                # free reshape


# --------------------------------------------------------------------- main --

if __name__ == "__main__":
    vocab_size, d_model, n_heads = 64, 32, 2
    dim_feedforward, n_layers = 64, 2
    S, B = 8, 2

    key = jax.random.PRNGKey(0)
    kparams, ktok = jax.random.split(key)
    params = init_params(kparams, vocab_size, d_model, n_heads,
                         dim_feedforward, n_layers)

    src = jax.random.randint(ktok, (S, B), 0, vocab_size, dtype=jnp.int32)
    # generate_square_subsequent_mask: True above the diagonal (masked)
    src_mask = jnp.triu(jnp.ones((S, S), dtype=bool), k=1)

    fwd = jax.jit(partial(transformer_forward, d_model=d_model,
                          n_heads=n_heads, n_layers=n_layers))
    out = fwd(params, src, src_mask)
    out = jax.block_until_ready(out)
    assert out.shape == (S, B, vocab_size), out.shape
    assert bool(jnp.all(jnp.isfinite(out)))
    print("KERNEL_OK")
</pallas_src>

<mosaic_0001>
module attributes {stable_mosaic.version = 11 : i64} {
  func.func @_decoder_kernel(%arg0: i32, %arg1: i32, %arg2: memref<16x32xbf16, #tpu.memory_space<vmem>>, %arg3: memref<32x64xbf16, #tpu.memory_space<vmem>>, %arg4: memref<1x64xf32, #tpu.memory_space<vmem>>, %arg5: memref<16x64xf32, #tpu.memory_space<vmem>>) attributes {dimension_semantics = [#tpu.dimension_semantics<parallel>, #tpu.dimension_semantics<parallel>], iteration_bounds = array<i64: 1, 1>, scalar_prefetch = 0 : i64, scratch_operands = 0 : i64, tpu.core_type = #tpu.core_type<tc>, window_params = [{transform_indices = @transform_0, window_bounds = array<i64: 16, 32>}, {transform_indices = @transform_1, window_bounds = array<i64: 32, 64>}, {transform_indices = @transform_2, window_bounds = array<i64: 1, 64>}, {transform_indices = @transform_3, window_bounds = array<i64: 16, 64>}]} {
    %c0 = arith.constant 0 : index
    %c0_0 = arith.constant 0 : index
    %0 = vector.load %arg2[%c0, %c0_0] : memref<16x32xbf16, #tpu.memory_space<vmem>>, vector<16x32xbf16>
    %c0_1 = arith.constant 0 : index
    %c0_2 = arith.constant 0 : index
    %1 = vector.load %arg3[%c0_1, %c0_2] : memref<32x64xbf16, #tpu.memory_space<vmem>>, vector<32x64xbf16>
    %cst = arith.constant dense<0.000000e+00> : vector<16x64xf32>
    %2 = tpu.matmul %0, %1, %cst {dimension_numbers = #tpu.dot_dimension_numbers<[1], [0], [0], [1], [0, 0, 1, 1], [], []>} : vector<16x32xbf16>, vector<32x64xbf16>, vector<16x64xf32> -> vector<16x64xf32>
    %c0_3 = arith.constant 0 : index
    %c0_4 = arith.constant 0 : index
    %3 = vector.load %arg4[%c0_3, %c0_4] : memref<1x64xf32, #tpu.memory_space<vmem>>, vector<1x64xf32>
    %4 = vector.broadcast %3 : vector<1x64xf32> to vector<16x64xf32>
    %5 = arith.addf %2, %4 : vector<16x64xf32>
    %c0_5 = arith.constant 0 : index
    %c0_6 = arith.constant 0 : index
    %6 = vector.load %arg5[%c0_5, %c0_6] : memref<16x64xf32, #tpu.memory_space<vmem>>, vector<16x64xf32>
    tpu.vector_store %arg5[%c0_5, %c0_6], %5 {strides = array<i32>} : memref<16x64xf32, #tpu.memory_space<vmem>>, vector<16x64xf32>,
    return
  }
  func.func @transform_0(%arg0: i32, %arg1: i32) -> (i32, i32) {
    %c0_i32 = arith.constant 0 : i32
    %c0_i32_0 = arith.constant 0 : i32
    return %arg1, %c0_i32 : i32, i32
  }
  func.func @transform_1(%arg0: i32, %arg1: i32) -> (i32, i32) {
    %c0_i32 = arith.constant 0 : i32
    %c0_i32_0 = arith.constant 0 : i32
    return %c0_i32, %arg0 : i32, i32
  }
  func.func @transform_2(%arg0: i32, %arg1: i32) -> (i32, i32) {
    %c0_i32 = arith.constant 0 : i32
    %c0_i32_0 = arith.constant 0 : i32
    return %c0_i32, %arg0 : i32, i32
  }
  func.func @transform_3(%arg0: i32, %arg1: i32) -> (i32, i32) {
    %c0_i32 = arith.constant 0 : i32
    return %arg1, %arg0 : i32, i32
  }
}

module attributes {stable_mosaic.version = 11 : i64} {
  func.func @_encoder_layer_kernel(%arg0: i32, %arg1: i32, %arg2: memref<1x8x32xf32, #tpu.memory_space<vmem>>, %arg3: memref<8x32xf32, #tpu.memory_space<vmem>>, %arg4: memref<8x8xf32, #tpu.memory_space<vmem>>, %arg5: memref<1x32x96xbf16, #tpu.memory_space<vmem>>, %arg6: memref<1x1x96xf32, #tpu.memory_space<vmem>>, %arg7: memref<1x32x32xbf16, #tpu.memory_space<vmem>>, %arg8: memref<1x1x32xf32, #tpu.memory_space<vmem>>, %arg9: memref<1x1x32xf32, #tpu.memory_space<vmem>>, %arg10: memref<1x1x32xf32, #tpu.memory_space<vmem>>, %arg11: memref<1x32x64xbf16, #tpu.memory_space<vmem>>, %arg12: memref<1x1x64xf32, #tpu.memory_space<vmem>>, %arg13: memref<1x64x32xbf16, #tpu.memory_space<vmem>>, %arg14: memref<1x1x32xf32, #tpu.memory_space<vmem>>, %arg15: memref<1x1x32xf32, #tpu.memory_space<vmem>>, %arg16: memref<1x1x32xf32, #tpu.memory_space<vmem>>, %arg17: memref<1x8x32xbf16, #tpu.memory_space<vmem>>, %arg18: memref<8x32xf32, #tpu.memory_space<vmem>>) attributes {dimension_semantics = [#tpu.dimension_semantics<parallel>, #tpu.dimension_semantics<arbitrary>], iteration_bounds = array<i64: 2, 2>, scalar_prefetch = 0 : i64, scratch_operands = 1 : i64, tpu.core_type = #tpu.core_type<tc>, window_params = [{transform_indices = @transform_0, window_bounds = array<i64: 1, 8, 32>}, {pipeline_mode = #tpu.pipeline_mode<synchronous>, transform_indices = @transform_1, window_bounds = array<i64: 8, 32>}, {pipeline_mode = #tpu.pipeline_mode<synchronous>, transform_indices = @transform_2, window_bounds = array<i64: 8, 8>}, {transform_indices = @transform_3, window_bounds = array<i64: 1, 32, 96>}, {transform_indices = @transform_4, window_bounds = array<i64: 1, 1, 96>}, {transform_indices = @transform_5, window_bounds = array<i64: 1, 32, 32>}, {transform_indices = @transform_6, window_bounds = array<i64: 1, 1, 32>}, {transform_indices = @transform_7, window_bounds = array<i64: 1, 1, 32>}, {transform_indices = @transform_8, window_bounds = array<i64: 1, 1, 32>}, {transform_indices = @transform_9, window_bounds = array<i64: 1, 32, 64>}, {transform_indices = @transform_10, window_bounds = array<i64: 1, 1, 64>}, {transform_indices = @transform_11, window_bounds = array<i64: 1, 64, 32>}, {transform_indices = @transform_12, window_bounds = array<i64: 1, 1, 32>}, {transform_indices = @transform_13, window_bounds = array<i64: 1, 1, 32>}, {transform_indices = @transform_14, window_bounds = array<i64: 1, 1, 32>}, {transform_indices = @transform_15, window_bounds = array<i64: 1, 8, 32>}]} {
    %c0_i32 = arith.constant 0 : i32
    %0 = arith.cmpi eq, %arg1, %c0_i32 : i32
    %1 = arith.extui %0 : i1 to i32
    %c0_i32_0 = arith.constant 0 : i32
    %2 = arith.cmpi ne, %1, %c0_i32_0 : i32
    scf.if %2 {
      %c0_66 = arith.constant 0 : index
      %c0_67 = arith.constant 0 : index
      %c0_68 = arith.constant 0 : index
      %142 = vector.load %arg2[%c0_66, %c0_67, %c0_68] : memref<1x8x32xf32, #tpu.memory_space<vmem>>, vector<1x8x32xf32>
      %143 = vector.shape_cast %142 : vector<1x8x32xf32> to vector<8x32xf32>
      %cst_69 = arith.constant 5.65685415 : f32
      %144 = vector.broadcast %cst_69 : f32 to vector<8x32xf32>
      %145 = arith.mulf %143, %144 : vector<8x32xf32>
      %c0_70 = arith.constant 0 : index
      %c0_71 = arith.constant 0 : index
      %146 = vector.load %arg3[%c0_70, %c0_71] : memref<8x32xf32, #tpu.memory_space<vmem>>, vector<8x32xf32>
      %147 = arith.addf %145, %146 : vector<8x32xf32>
      %c0_72 = arith.constant 0 : index
      %c0_73 = arith.constant 0 : index
      %148 = vector.load %arg18[%c0_72, %c0_73] : memref<8x32xf32, #tpu.memory_space<vmem>>, vector<8x32xf32>
      tpu.vector_store %arg18[%c0_72, %c0_73], %147 {strides = array<i32>} : memref<8x32xf32, #tpu.memory_space<vmem>>, vector<8x32xf32>,
    } else {
    }
    %c0 = arith.constant 0 : index
    %c0_1 = arith.constant 0 : index
    %3 = vector.load %arg18[%c0, %c0_1] : memref<8x32xf32, #tpu.memory_space<vmem>>, vector<8x32xf32>
    %c0_2 = arith.constant 0 : index
    %c0_3 = arith.constant 0 : index
    %4 = vector.load %arg4[%c0_2, %c0_3] : memref<8x8xf32, #tpu.memory_space<vmem>>, vector<8x8xf32>
    %5 = arith.truncf %3 : vector<8x32xf32> to vector<8x32xbf16>
    %c0_4 = arith.constant 0 : index
    %c0_5 = arith.constant 0 : index
    %c0_6 = arith.constant 0 : index
    %6 = vector.load %arg5[%c0_4, %c0_5, %c0_6] : memref<1x32x96xbf16, #tpu.memory_space<vmem>>, vector<1x32x96xbf16>
    %7 = vector.shape_cast %6 : vector<1x32x96xbf16> to vector<32x96xbf16>
    %cst = arith.constant dense<0.000000e+00> : vector<8x96xf32>
    %8 = tpu.matmul %5, %7, %cst {dimension_numbers = #tpu.dot_dimension_numbers<[1], [0], [0], [1], [0, 0, 1, 1], [], []>} : vector<8x32xbf16>, vector<32x96xbf16>, vector<8x96xf32> -> vector<8x96xf32>
    %c0_7 = arith.constant 0 : index
    %c0_8 = arith.constant 0 : index
    %c0_9 = arith.constant 0 : index
    %9 = vector.load %arg6[%c0_7, %c0_8, %c0_9] : memref<1x1x96xf32, #tpu.memory_space<vmem>>, vector<1x1x96xf32>
    %10 = vector.shape_cast %9 : vector<1x1x96xf32> to vector<1x96xf32>
    %11 = vector.broadcast %10 : vector<1x96xf32> to vector<8x96xf32>
    %12 = arith.addf %8, %11 : vector<8x96xf32>
    %13 = vector.extract_strided_slice %12 {offsets = [0, 0], sizes = [8, 32], strides = [1, 1]} : vector<8x96xf32> to vector<8x32xf32>
    %cst_10 = arith.constant 2.500000e-01 : f32
    %14 = vector.broadcast %cst_10 : f32 to vector<8x32xf32>
    %15 = arith.mulf %13, %14 : vector<8x32xf32>
    %16 = vector.extract_strided_slice %12 {offsets = [0, 32], sizes = [8, 32], strides = [1, 1]} : vector<8x96xf32> to vector<8x32xf32>
    %17 = arith.truncf %16 : vector<8x32xf32> to vector<8x32xbf16>
    %18 = vector.extract_strided_slice %12 {offsets = [0, 64], sizes = [8, 32], strides = [1, 1]} : vector<8x96xf32> to vector<8x32xf32>
    %19 = vector.extract_strided_slice %15 {offsets = [0, 0], sizes = [8, 16], strides = [1, 1]} : vector<8x32xf32> to vector<8x16xf32>
    %20 = arith.truncf %19 : vector<8x16xf32> to vector<8x16xbf16>
    %21 = vector.extract_strided_slice %17 {offsets = [0, 0], sizes = [8, 16], strides = [1, 1]} : vector<8x32xbf16> to vector<8x16xbf16>
    %22 = vector.extract_strided_slice %18 {offsets = [0, 0], sizes = [8, 16], strides = [1, 1]} : vector<8x32xf32> to vector<8x16xf32>
    %23 = arith.truncf %22 : vector<8x16xf32> to vector<8x16xbf16>
    %cst_11 = arith.constant dense<0.000000e+00> : vector<8x8xf32>
    %24 = tpu.matmul %20, %21, %cst_11 {dimension_numbers = #tpu.dot_dimension_numbers<[1], [1], [0], [0], [0, 0, 1, 0], [], []>} : vector<8x16xbf16>, vector<8x16xbf16>, vector<8x8xf32> -> vector<8x8xf32>
    %25 = arith.addf %24, %4 : vector<8x8xf32>
    %cst_12 = arith.constant dense<0xFF800000> : vector<8xf32>
    %26 = vector.multi_reduction <maximumf>, %25, %cst_12 [1] : vector<8x8xf32> to vector<8xf32>
    %27 = vector.shape_cast %26 : vector<8xf32> to vector<8x1xf32>
    %28 = vector.broadcast %27 : vector<8x1xf32> to vector<8x8xf32>
    %29 = arith.subf %25, %28 : vector<8x8xf32>
    %30 = math.exp %29 : vector<8x8xf32>
    %cst_13 = arith.constant dense<0.000000e+00> : vector<8xf32>
    %31 = vector.multi_reduction <add>, %30, %cst_13 [1] : vector<8x8xf32> to vector<8xf32>
    %32 = vector.shape_cast %31 : vector<8xf32> to vector<8x1xf32>
    %33 = tpu.reciprocal %32 {approx = true} : vector<8x1xf32> -> vector<8x1xf32>
    %34 = vector.broadcast %33 : vector<8x1xf32> to vector<8x8xf32>
    %35 = arith.mulf %30, %34 : vector<8x8xf32>
    %36 = arith.truncf %35 : vector<8x8xf32> to vector<8x8xbf16>
    %cst_14 = arith.constant dense<0.000000e+00> : vector<8x16xf32>
    %37 = tpu.matmul %36, %23, %cst_14 {dimension_numbers = #tpu.dot_dimension_numbers<[1], [0], [0], [1], [0, 0, 1, 1], [], []>} : vector<8x8xbf16>, vector<8x16xbf16>, vector<8x16xf32> -> vector<8x16xf32>
    %38 = vector.extract_strided_slice %15 {offsets = [0, 16], sizes = [8, 16], strides = [1, 1]} : vector<8x32xf32> to vector<8x16xf32>
    %39 = arith.truncf %38 : vector<8x16xf32> to vector<8x16xbf16>
    %40 = vector.extract_strided_slice %17 {offsets = [0, 16], sizes = [8, 16], strides = [1, 1]} : vector<8x32xbf16> to vector<8x16xbf16>
    %41 = vector.extract_strided_slice %18 {offsets = [0, 16], sizes = [8, 16], strides = [1, 1]} : vector<8x32xf32> to vector<8x16xf32>
    %42 = arith.truncf %41 : vector<8x16xf32> to vector<8x16xbf16>
    %cst_15 = arith.constant dense<0.000000e+00> : vector<8x8xf32>
    %43 = tpu.matmul %39, %40, %cst_15 {dimension_numbers = #tpu.dot_dimension_numbers<[1], [1], [0], [0], [0, 0, 1, 0], [], []>} : vector<8x16xbf16>, vector<8x16xbf16>, vector<8x8xf32> -> vector<8x8xf32>
    %44 = arith.addf %43, %4 : vector<8x8xf32>
    %cst_16 = arith.constant dense<0xFF800000> : vector<8xf32>
    %45 = vector.multi_reduction <maximumf>, %44, %cst_16 [1] : vector<8x8xf32> to vector<8xf32>
    %46 = vector.shape_cast %45 : vector<8xf32> to vector<8x1xf32>
    %47 = vector.broadcast %46 : vector<8x1xf32> to vector<8x8xf32>
    %48 = arith.subf %44, %47 : vector<8x8xf32>
    %49 = math.exp %48 : vector<8x8xf32>
    %cst_17 = arith.constant dense<0.000000e+00> : vector<8xf32>
    %50 = vector.multi_reduction <add>, %49, %cst_17 [1] : vector<8x8xf32> to vector<8xf32>
    %51 = vector.shape_cast %50 : vector<8xf32> to vector<8x1xf32>
    %52 = tpu.reciprocal %51 {approx = true} : vector<8x1xf32> -> vector<8x1xf32>
    %53 = vector.broadcast %52 : vector<8x1xf32> to vector<8x8xf32>
    %54 = arith.mulf %49, %53 : vector<8x8xf32>
    %55 = arith.truncf %54 : vector<8x8xf32> to vector<8x8xbf16>
    %cst_18 = arith.constant dense<0.000000e+00> : vector<8x16xf32>
    %56 = tpu.matmul %55, %42, %cst_18 {dimension_numbers = #tpu.dot_dimension_numbers<[1], [0], [0], [1], [0, 0, 1, 1], [], []>} : vector<8x8xbf16>, vector<8x16xbf16>, vector<8x16xf32> -> vector<8x16xf32>
    %57 = tpu.concatenate %37, %56 in 1 : vector<8x16xf32>, vector<8x16xf32> -> vector<8x32xf32>
    %58 = arith.truncf %57 : vector<8x32xf32> to vector<8x32xbf16>
    %c0_19 = arith.constant 0 : index
    %c0_20 = arith.constant 0 : index
    %c0_21 = arith.constant 0 : index
    %59 = vector.load %arg7[%c0_19, %c0_20, %c0_21] : memref<1x32x32xbf16, #tpu.memory_space<vmem>>, vector<1x32x32xbf16>
    %60 = vector.shape_cast %59 : vector<1x32x32xbf16> to vector<32x32xbf16>
    %cst_22 = arith.constant dense<0.000000e+00> : vector<8x32xf32>
    %61 = tpu.matmul %58, %60, %cst_22 {dimension_numbers = #tpu.dot_dimension_numbers<[1], [0], [0], [1], [0, 0, 1, 1], [], []>} : vector<8x32xbf16>, vector<32x32xbf16>, vector<8x32xf32> -> vector<8x32xf32>
    %c0_23 = arith.constant 0 : index
    %c0_24 = arith.constant 0 : index
    %c0_25 = arith.constant 0 : index
    %62 = vector.load %arg8[%c0_23, %c0_24, %c0_25] : memref<1x1x32xf32, #tpu.memory_space<vmem>>, vector<1x1x32xf32>
    %63 = vector.shape_cast %62 : vector<1x1x32xf32> to vector<1x32xf32>
    %64 = vector.broadcast %63 : vector<1x32xf32> to vector<8x32xf32>
    %65 = arith.addf %61, %64 : vector<8x32xf32>
    %66 = arith.addf %3, %65 : vector<8x32xf32>
    %c0_26 = arith.constant 0 : index
    %c0_27 = arith.constant 0 : index
    %c0_28 = arith.constant 0 : index
    %67 = vector.load %arg9[%c0_26, %c0_27, %c0_28] : memref<1x1x32xf32, #tpu.memory_space<vmem>>, vector<1x1x32xf32>
    %68 = vector.shape_cast %67 : vector<1x1x32xf32> to vector<1x32xf32>
    %c0_29 = arith.constant 0 : index
    %c0_30 = arith.constant 0 : index
    %c0_31 = arith.constant 0 : index
    %69 = vector.load %arg10[%c0_29, %c0_30, %c0_31] : memref<1x1x32xf32, #tpu.memory_space<vmem>>, vector<1x1x32xf32>
    %70 = vector.shape_cast %69 : vector<1x1x32xf32> to vector<1x32xf32>
    %cst_32 = arith.constant dense<0.000000e+00> : vector<8xf32>
    %71 = vector.multi_reduction <add>, %66, %cst_32 [1] : vector<8x32xf32> to vector<8xf32>
    %72 = vector.shape_cast %71 : vector<8xf32> to vector<8x1xf32>
    %cst_33 = arith.constant 3.200000e+01 : f32
    %73 = vector.broadcast %cst_33 : f32 to vector<8x1xf32>
    %74 = arith.divf %72, %73 : vector<8x1xf32>
    %75 = vector.broadcast %74 : vector<8x1xf32> to vector<8x32xf32>
    %76 = arith.subf %66, %75 : vector<8x32xf32>
    %77 = arith.mulf %76, %76 : vector<8x32xf32>
    %cst_34 = arith.constant dense<0.000000e+00> : vector<8xf32>
    %78 = vector.multi_reduction <add>, %77, %cst_34 [1] : vector<8x32xf32> to vector<8xf32>
    %79 = vector.shape_cast %78 : vector<8xf32> to vector<8x1xf32>
    %cst_35 = arith.constant 3.200000e+01 : f32
    %80 = vector.broadcast %cst_35 : f32 to vector<8x1xf32>
    %81 = arith.divf %79, %80 : vector<8x1xf32>
    %82 = vector.broadcast %74 : vector<8x1xf32> to vector<8x32xf32>
    %83 = arith.subf %66, %82 : vector<8x32xf32>
    %cst_36 = arith.constant 9.99999974E-6 : f32
    %84 = vector.broadcast %cst_36 : f32 to vector<8x1xf32>
    %85 = arith.addf %81, %84 : vector<8x1xf32>
    %86 = math.rsqrt %85 : vector<8x1xf32>
    %87 = vector.broadcast %86 : vector<8x1xf32> to vector<8x32xf32>
    %88 = arith.mulf %83, %87 : vector<8x32xf32>
    %89 = vector.broadcast %68 : vector<1x32xf32> to vector<8x32xf32>
    %90 = arith.mulf %88, %89 : vector<8x32xf32>
    %91 = vector.broadcast %70 : vector<1x32xf32> to vector<8x32xf32>
    %92 = arith.addf %90, %91 : vector<8x32xf32>
    %93 = arith.truncf %92 : vector<8x32xf32> to vector<8x32xbf16>
    %c0_37 = arith.constant 0 : index
    %c0_38 = arith.constant 0 : index
    %c0_39 = arith.constant 0 : index
    %94 = vector.load %arg11[%c0_37, %c0_38, %c0_39] : memref<1x32x64xbf16, #tpu.memory_space<vmem>>, vector<1x32x64xbf16>
    %95 = vector.shape_cast %94 : vector<1x32x64xbf16> to vector<32x64xbf16>
    %cst_40 = arith.constant dense<0.000000e+00> : vector<8x64xf32>
    %96 = tpu.matmul %93, %95, %cst_40 {dimension_numbers = #tpu.dot_dimension_numbers<[1], [0], [0], [1], [0, 0, 1, 1], [], []>} : vector<8x32xbf16>, vector<32x64xbf16>, vector<8x64xf32> -> vector<8x64xf32>
    %c0_41 = arith.constant 0 : index
    %c0_42 = arith.constant 0 : index
    %c0_43 = arith.constant 0 : index
    %97 = vector.load %arg12[%c0_41, %c0_42, %c0_43] : memref<1x1x64xf32, #tpu.memory_space<vmem>>, vector<1x1x64xf32>
    %98 = vector.shape_cast %97 : vector<1x1x64xf32> to vector<1x64xf32>
    %99 = vector.broadcast %98 : vector<1x64xf32> to vector<8x64xf32>
    %100 = arith.addf %96, %99 : vector<8x64xf32>
    %cst_44 = arith.constant 0.000000e+00 : f32
    %101 = vector.broadcast %cst_44 : f32 to vector<8x64xf32>
    %102 = arith.maximumf %100, %101 : vector<8x64xf32>
    %103 = arith.truncf %102 : vector<8x64xf32> to vector<8x64xbf16>
    %c0_45 = arith.constant 0 : index
    %c0_46 = arith.constant 0 : index
    %c0_47 = arith.constant 0 : index
    %104 = vector.load %arg13[%c0_45, %c0_46, %c0_47] : memref<1x64x32xbf16, #tpu.memory_space<vmem>>, vector<1x64x32xbf16>
    %105 = vector.shape_cast %104 : vector<1x64x32xbf16> to vector<64x32xbf16>
    %cst_48 = arith.constant dense<0.000000e+00> : vector<8x32xf32>
    %106 = tpu.matmul %103, %105, %cst_48 {dimension_numbers = #tpu.dot_dimension_numbers<[1], [0], [0], [1], [0, 0, 1, 1], [], []>} : vector<8x64xbf16>, vector<64x32xbf16>, vector<8x32xf32> -> vector<8x32xf32>
    %c0_49 = arith.constant 0 : index
    %c0_50 = arith.constant 0 : index
    %c0_51 = arith.constant 0 : index
    %107 = vector.load %arg14[%c0_49, %c0_50, %c0_51] : memref<1x1x32xf32, #tpu.memory_space<vmem>>, vector<1x1x32xf32>
    %108 = vector.shape_cast %107 : vector<1x1x32xf32> to vector<1x32xf32>
    %109 = vector.broadcast %108 : vector<1x32xf32> to vector<8x32xf32>
    %110 = arith.addf %106, %109 : vector<8x32xf32>
    %111 = arith.addf %92, %110 : vector<8x32xf32>
    %c0_52 = arith.constant 0 : index
    %c0_53 = arith.constant 0 : index
    %c0_54 = arith.constant 0 : index
    %112 = vector.load %arg15[%c0_52, %c0_53, %c0_54] : memref<1x1x32xf32, #tpu.memory_space<vmem>>, vector<1x1x32xf32>
    %113 = vector.shape_cast %112 : vector<1x1x32xf32> to vector<1x32xf32>
    %c0_55 = arith.constant 0 : index
    %c0_56 = arith.constant 0 : index
    %c0_57 = arith.constant 0 : index
    %114 = vector.load %arg16[%c0_55, %c0_56, %c0_57] : memref<1x1x32xf32, #tpu.memory_space<vmem>>, vector<1x1x32xf32>
    %115 = vector.shape_cast %114 : vector<1x1x32xf32> to vector<1x32xf32>
    %cst_58 = arith.constant dense<0.000000e+00> : vector<8xf32>
    %116 = vector.multi_reduction <add>, %111, %cst_58 [1] : vector<8x32xf32> to vector<8xf32>
    %117 = vector.shape_cast %116 : vector<8xf32> to vector<8x1xf32>
    %cst_59 = arith.constant 3.200000e+01 : f32
    %118 = vector.broadcast %cst_59 : f32 to vector<8x1xf32>
    %119 = arith.divf %117, %118 : vector<8x1xf32>
    %120 = vector.broadcast %119 : vector<8x1xf32> to vector<8x32xf32>
    %121 = arith.subf %111, %120 : vector<8x32xf32>
    %122 = arith.mulf %121, %121 : vector<8x32xf32>
    %cst_60 = arith.constant dense<0.000000e+00> : vector<8xf32>
    %123 = vector.multi_reduction <add>, %122, %cst_60 [1] : vector<8x32xf32> to vector<8xf32>
    %124 = vector.shape_cast %123 : vector<8xf32> to vector<8x1xf32>
    %cst_61 = arith.constant 3.200000e+01 : f32
    %125 = vector.broadcast %cst_61 : f32 to vector<8x1xf32>
    %126 = arith.divf %124, %125 : vector<8x1xf32>
    %127 = vector.broadcast %119 : vector<8x1xf32> to vector<8x32xf32>
    %128 = arith.subf %111, %127 : vector<8x32xf32>
    %cst_62 = arith.constant 9.99999974E-6 : f32
    %129 = vector.broadcast %cst_62 : f32 to vector<8x1xf32>
    %130 = arith.addf %126, %129 : vector<8x1xf32>
    %131 = math.rsqrt %130 : vector<8x1xf32>
    %132 = vector.broadcast %131 : vector<8x1xf32> to vector<8x32xf32>
    %133 = arith.mulf %128, %132 : vector<8x32xf32>
    %134 = vector.broadcast %113 : vector<1x32xf32> to vector<8x32xf32>
    %135 = arith.mulf %133, %134 : vector<8x32xf32>
    %136 = vector.broadcast %115 : vector<1x32xf32> to vector<8x32xf32>
    %137 = arith.addf %135, %136 : vector<8x32xf32>
    %c0_63 = arith.constant 0 : index
    %c0_64 = arith.constant 0 : index
    %138 = vector.load %arg18[%c0_63, %c0_64] : memref<8x32xf32, #tpu.memory_space<vmem>>, vector<8x32xf32>
    tpu.vector_store %arg18[%c0_63, %c0_64], %137 {strides = array<i32>} : memref<8x32xf32, #tpu.memory_space<vmem>>, vector<8x32xf32>,
    %c1_i32 = arith.constant 1 : i32
    %139 = arith.cmpi eq, %arg1, %c1_i32 : i32
    %140 = arith.extui %139 : i1 to i32
    %c0_i32_65 = arith.constant 0 : i32
    %141 = arith.cmpi ne, %140, %c0_i32_65 : i32
    scf.if %141 {
      %142 = arith.truncf %137 : vector<8x32xf32> to vector<8x32xbf16>
      %c0_66 = arith.constant 0 : index
      %c0_67 = arith.constant 0 : index
      %c0_68 = arith.constant 0 : index
      %143 = vector.load %arg17[%c0_66, %c0_67, %c0_68] : memref<1x8x32xbf16, #tpu.memory_space<vmem>>, vector<1x8x32xbf16>
      %144 = vector.shape_cast %143 : vector<1x8x32xbf16> to vector<8x32xbf16>
      %145 = vector.shape_cast %142 : vector<8x32xbf16> to vector<1x8x32xbf16>
      tpu.vector_store %arg17[%c0_66, %c0_67, %c0_68], %145 {strides = array<i32>} : memref<1x8x32xbf16, #tpu.memory_space<vmem>>, vector<1x8x32xbf16>,
    } else {
    }
    return
  }
  func.func @transform_0(%arg0: i32, %arg1: i32) -> (i32, i32, i32) {
    %c0_i32 = arith.constant 0 : i32
    %c0_i32_0 = arith.constant 0 : i32
    %c0_i32_1 = arith.constant 0 : i32
    return %arg0, %c0_i32, %c0_i32_0 : i32, i32, i32
  }
  func.func @transform_1(%arg0: i32, %arg1: i32) -> (i32, i32) {
    %c0_i32 = arith.constant 0 : i32
    %c0_i32_0 = arith.constant 0 : i32
    %c0_i32_1 = arith.constant 0 : i32
    return %c0_i32, %c0_i32_0 : i32, i32
  }
  func.func @transform_2(%arg0: i32, %arg1: i32) -> (i32, i32) {
    %c0_i32 = arith.constant 0 : i32
    %c0_i32_0 = arith.constant 0 : i32
    %c0_i32_1 = arith.constant 0 : i32
    return %c0_i32, %c0_i32_0 : i32, i32
  }
  func.func @transform_3(%arg0: i32, %arg1: i32) -> (i32, i32, i32) {
    %c0_i32 = arith.constant 0 : i32
    %c0_i32_0 = arith.constant 0 : i32
    %c0_i32_1 = arith.constant 0 : i32
    return %arg1, %c0_i32, %c0_i32_0 : i32, i32, i32
  }
  func.func @transform_4(%arg0: i32, %arg1: i32) -> (i32, i32, i32) {
    %c0_i32 = arith.constant 0 : i32
    %c0_i32_0 = arith.constant 0 : i32
    %c0_i32_1 = arith.constant 0 : i32
    return %arg1, %c0_i32, %c0_i32_0 : i32, i32, i32
  }
  func.func @transform_5(%arg0: i32, %arg1: i32) -> (i32, i32, i32) {
    %c0_i32 = arith.constant 0 : i32
    %c0_i32_0 = arith.constant 0 : i32
    %c0_i32_1 = arith.constant 0 : i32
    return %arg1, %c0_i32, %c0_i32_0 : i32, i32, i32
  }
  func.func @transform_6(%arg0: i32, %arg1: i32) -> (i32, i32, i32) {
    %c0_i32 = arith.constant 0 : i32
    %c0_i32_0 = arith.constant 0 : i32
    %c0_i32_1 = arith.constant 0 : i32
    return %arg1, %c0_i32, %c0_i32_0 : i32, i32, i32
  }
  func.func @transform_7(%arg0: i32, %arg1: i32) -> (i32, i32, i32) {
    %c0_i32 = arith.constant 0 : i32
    %c0_i32_0 = arith.constant 0 : i32
    %c0_i32_1 = arith.constant 0 : i32
    return %arg1, %c0_i32, %c0_i32_0 : i32, i32, i32
  }
  func.func @transform_8(%arg0: i32, %arg1: i32) -> (i32, i32, i32) {
    %c0_i32 = arith.constant 0 : i32
    %c0_i32_0 = arith.constant 0 : i32
    %c0_i32_1 = arith.constant 0 : i32
    return %arg1, %c0_i32, %c0_i32_0 : i32, i32, i32
  }
  func.func @transform_9(%arg0: i32, %arg1: i32) -> (i32, i32, i32) {
    %c0_i32 = arith.constant 0 : i32
    %c0_i32_0 = arith.constant 0 : i32
    %c0_i32_1 = arith.constant 0 : i32
    return %arg1, %c0_i32, %c0_i32_0 : i32, i32, i32
  }
  func.func @transform_10(%arg0: i32, %arg1: i32) -> (i32, i32, i32) {
    %c0_i32 = arith.constant 0 : i32
    %c0_i32_0 = arith.constant 0 : i32
    %c0_i32_1 = arith.constant 0 : i32
    return %arg1, %c0_i32, %c0_i32_0 : i32, i32, i32
  }
  func.func @transform_11(%arg0: i32, %arg1: i32) -> (i32, i32, i32) {
    %c0_i32 = arith.constant 0 : i32
    %c0_i32_0 = arith.constant 0 : i32
    %c0_i32_1 = arith.constant 0 : i32
    return %arg1, %c0_i32, %c0_i32_0 : i32, i32, i32
  }
  func.func @transform_12(%arg0: i32, %arg1: i32) -> (i32, i32, i32) {
    %c0_i32 = arith.constant 0 : i32
    %c0_i32_0 = arith.constant 0 : i32
    %c0_i32_1 = arith.constant 0 : i32
    return %arg1, %c0_i32, %c0_i32_0 : i32, i32, i32
  }
  func.func @transform_13(%arg0: i32, %arg1: i32) -> (i32, i32, i32) {
    %c0_i32 = arith.constant 0 : i32
    %c0_i32_0 = arith.constant 0 : i32
    %c0_i32_1 = arith.constant 0 : i32
    return %arg1, %c0_i32, %c0_i32_0 : i32, i32, i32
  }
  func.func @transform_14(%arg0: i32, %arg1: i32) -> (i32, i32, i32) {
    %c0_i32 = arith.constant 0 : i32
    %c0_i32_0 = arith.constant 0 : i32
    %c0_i32_1 = arith.constant 0 : i32
    return %arg1, %c0_i32, %c0_i32_0 : i32, i32, i32
  }
  func.func @transform_15(%arg0: i32, %arg1: i32) -> (i32, i32, i32) {
    %c0_i32 = arith.constant 0 : i32
    %c0_i32_0 = arith.constant 0 : i32
    %c0_i32_1 = arith.constant 0 : i32
    return %arg0, %c0_i32, %c0_i32_0 : i32, i32, i32
  }
}

</mosaic_0001>

<llo_original>
// kernel: transformer_forward.3
$region0: #{transformer_forward.3}
  #allocation0 [shape = 'u32[]', space=smem, size = 0x4, offset = 0x4, fixed_abs, tag = 'smem constant byte address 0x4 - core index']
  #allocation1 [shape = 'u32[144,128]{1,0:T(1,128)}', space=vmem, size = 0x12000, scoped, tag = 'internal scratch']
  %s0 = inlined_call_operand.vmem [shape: bf16[16,32], index: 0, kind: input, shape index: {}]
  %s1 = inlined_call_operand.vmem [shape: bf16[32,64], index: 1, kind: input, shape index: {}]
  %s2 = inlined_call_operand.vmem [shape: f32[1,64], index: 2, kind: input, shape index: {}]
  %s3 = inlined_call_operand.hbm [shape: f32[16,64], index: 3, kind: output, shape index: {}]
  %s4 = sld [smem:[#allocation0]]
  $region22: #{transformer_forward.3} parent=0
    _
  %s6 = ssub.s32 1, %s4
  %s7 = scalar_select 0, %s6, %s4
  $region1: #{transformer_forward.3} parent=0
    #allocation2 [shape = 'u8[8192]{0}', space=vmem, size = 0x2000, scoped, tag = 'output window, operand 0, single buffered']
    #allocation3 [shape = 's32[1]{0}', space=sflag, size = 0x4, scoped, tag = 'scoped memory for transformer_forward.3']
    %8 = vsyncpa [#allocation3], 0
    // Predicated region
    $region2: #{transformer_forward.3} parent=1 // pred_check
      _
    $region3: #{transformer_forward.3} parent=1 // pred_check_branch
      %10 = sbr.rel (0) target = $region5
    $region4: #{transformer_forward.3} parent=1 // pred_region
      _
    $region5: #{transformer_forward.3} parent=1 // pred_fallthru
      _
    // Predicated region
    $region6: #{transformer_forward.3} parent=1 // pred_check
      _
    $region7: #{transformer_forward.3} parent=1 // pred_check_branch
      %12 = sbr.rel (0) target = $region9
    $region8: #{transformer_forward.3} parent=1 // pred_region
      _
    $region9: #{transformer_forward.3} parent=1 // pred_fallthru
      _
    // Predicated region
    $region10: #{transformer_forward.3} parent=1 // pred_check
      _
    $region11: #{transformer_forward.3} parent=1 // pred_check_branch
      %14 = sbr.rel (0) target = $region13
    $region12: #{transformer_forward.3} parent=1 // pred_region
      _
    $region13: #{transformer_forward.3} parent=1 // pred_fallthru
      _
    %v16 = vld [vmem:[%s0] sm:$0xf]
    %v17 = vld [vmem:[%s0 + $0x4] sm:$0xf]
    %v18 = vld [vmem:[%s1] sm:$0xf]
    %v19 = vld [vmem:[%s1 + $0x4] sm:$0xf]
    %v20 = vld [vmem:[%s1 + $0x8] sm:$0xf]
    %v21 = vld [vmem:[%s1 + $0xc] sm:$0xf]
    %v22 = vld [vmem:[%s2] sm:$0x1]
    %v24 = vlaneseq
    %v25 = vshrl.u32 %v24, 7
    %v26 = vsub.s32 0, %v25
    %v27 = vrot.slane %v22, %v26
    %v31 = vunpack.c.l.b16 %v16
    %v32 = vunpack.c.l.b16 %v17
    %v33 = vpack.c.b16 %v32, %v31
    %v38 = vunpack.c.l.b16 %v18
    %v39 = vunpack.c.l.b16 %v19
    %v40 = vunpack.c.l.b16 %v20
    %v41 = vunpack.c.l.b16 %v21
    %v42 = vpack.c.b16 %v39, %v38
    %v43 = vpack.c.b16 %v41, %v40
    %vm46 = vcmask 261120
    %v48 = vsel %vm46, %v33, 0
    %50 = vmatprep.subr.bf16.mxu0 0
    %51 = vmatpush1.bf16.msra.mxu0 %v42
    %52 = vmatprep.subr.bf16.mxu0 0
    %53 = vmatpush1.bf16.msra.mxu0 %v43
    %54 = vmatprep.subr.bf16.mxu0 0
    %55 = vmatpush1.bf16.msra.mxu0 0
    %56 = vmatprep.subr.bf16.mxu0 0
    %57 = vmatpush1.bf16.msra.mxu0 0
    %58 = vmatprep.subr.bf16.mxu0 0
    %59 = vmatpush1.bf16.msra.mxu0 0
    %60 = vmatprep.subr.bf16.mxu0 0
    %61 = vmatpush1.bf16.msra.mxu0 0
    %62 = vmatprep.subr.bf16.mxu0 0
    %63 = vmatpush1.bf16.msra.mxu0 0
    %64 = vmatprep.subr.bf16.mxu0 0
    %65 = vmatpush1.bf16.msra.mxu0 0
    %66 = vmatprep.subr.bf16.mxu0 0
    %67 = vmatpush1.bf16.msra.mxu0 0
    %68 = vmatprep.subr.bf16.mxu0 0
    %69 = vmatpush1.bf16.msra.mxu0 0
    %70 = vmatprep.subr.bf16.mxu0 0
    %71 = vmatpush1.bf16.msra.mxu0 0
    %72 = vmatprep.subr.bf16.mxu0 0
    %73 = vmatpush1.bf16.msra.mxu0 0
    %74 = vmatprep.subr.bf16.mxu0 0
    %75 = vmatpush1.bf16.msra.mxu0 0
    %76 = vmatprep.subr.bf16.mxu0 0
    %77 = vmatpush1.bf16.msra.mxu0 0
    %78 = vmatprep.subr.bf16.mxu0 0
    %79 = vmatpush1.bf16.msra.mxu0 0
    %80 = vmatprep.subr.bf16.mxu0 0
    %81 = vmatpush1.bf16.msra.mxu0 0
    %82 = vmatprep.mubr.bf16.mxu0 0
    %83 = vmatmul.mubr.bf16.gmra.mrb[0].mxu0 %v48
    %v84 = vpop.f32.mrb[0].mxu0
    %v85 = vadd.f32 %v27, %v84
    %v86 = vpop.f32.mrb[0].mxu0
    %v87 = vpop.f32.mrb[0].mxu0
    %v88 = vadd.f32 %v27, %v87
    %v89 = vpop.f32.mrb[0].mxu0
    %90 = vdwg.mxu0
    %vm91 = vcmask 523264
    %92 = vst.msk [vmem:[#allocation2] sm:$0xff] %vm91, %v85
    %93 = vst.msk [vmem:[#allocation2 + $0x8] sm:$0xff] %vm91, %v88
    // Predicated region
    $region14: #{transformer_forward.3} parent=1 // pred_check
      _
    $region15: #{transformer_forward.3} parent=1 // pred_check_branch
      %95 = sbr.rel (0) target = $region17
    $region16: #{transformer_forward.3} parent=1 // pred_region
      %s97 = ssub.s32 256, 256
      %98 = vsyncadd [#allocation3], %s97
      %s99 = sshll.u32 [#allocation2], 4
      %s100 = int_to_ptr.vmem [resolvable:$true] %s99
      %105 = dma.vmem_to_hbm [thread:$0]  %s100, 256, %s3, [#allocation3], 128, 128, 8
    $region17: #{transformer_forward.3} parent=1 // pred_fallthru
      _
    // Predicated region
    $region18: #{transformer_forward.3} parent=1 // pred_check
      _
    $region19: #{transformer_forward.3} parent=1 // pred_check_branch
      %107 = sbr.rel (0) target = $region21
    $region20: #{transformer_forward.3} parent=1 // pred_region
      %108 = dma.done [#allocation3], 256
    $region21: #{transformer_forward.3} parent=1 // pred_fallthru
      _
    %109 = vsyncpa [#allocation3], 1

// kernel: transformer_forward.2
$region0: #{transformer_forward.2}
  #allocation0 [shape = 'u32[]', space=smem, size = 0x4, offset = 0x4, fixed_abs, tag = 'smem constant byte address 0x4 - core index']
  #allocation1 [shape = 'u32[144,128]{1,0:T(1,128)}', space=vmem, size = 0x12000, scoped, tag = 'internal scratch']
  #allocation2 [shape = 'f32[8,32]{1,0:T(8,128)}', space=vmem, size = 0x1000, scoped, tag = 'scratch operand']
  %s0 = inlined_call_operand.vmem [shape: f32[2,8,32], index: 0, kind: input, shape index: {}]
  %s1 = inlined_call_operand.vmem [shape: f32[8,32], index: 1, kind: input, shape index: {}]
  %s2 = inlined_call_operand.vmem [shape: f32[8,8], index: 2, kind: input, shape index: {}]
  %s3 = inlined_call_operand.vmem [shape: bf16[2,32,96], index: 3, kind: input, shape index: {}]
  %s4 = inlined_call_operand.vmem [shape: f32[2,1,96], index: 4, kind: input, shape index: {}]
  %s5 = inlined_call_operand.vmem [shape: bf16[2,32,32], index: 5, kind: input, shape index: {}]
  %s6 = inlined_call_operand.vmem [shape: f32[2,1,32], index: 6, kind: input, shape index: {}]
  %s7 = inlined_call_operand.vmem [shape: f32[2,1,32], index: 7, kind: input, shape index: {}]
  %s8 = inlined_call_operand.vmem [shape: f32[2,1,32], index: 8, kind: input, shape index: {}]
  %s9 = inlined_call_operand.vmem [shape: bf16[2,32,64], index: 9, kind: input, shape index: {}]
  %s10 = inlined_call_operand.vmem [shape: f32[2,1,64], index: 10, kind: input, shape index: {}]
  %s11 = inlined_call_operand.vmem [shape: bf16[2,64,32], index: 11, kind: input, shape index: {}]
  %s12 = inlined_call_operand.vmem [shape: f32[2,1,32], index: 12, kind: input, shape index: {}]
  %s13 = inlined_call_operand.vmem [shape: f32[2,1,32], index: 13, kind: input, shape index: {}]
  %s14 = inlined_call_operand.vmem [shape: f32[2,1,32], index: 14, kind: input, shape index: {}]
  %s15 = inlined_call_operand.vmem [shape: bf16[2,8,32], index: 15, kind: output, shape index: {}]
  %s16 = sld [smem:[#allocation0]]
  $region101: #{transformer_forward.2} parent=0
    _
  %s18 = ssub.s32 1, %s16
  %s19 = scalar_select 0, %s18, %s16
  loop: start=0, step=1, limit=6
  $region2: #{transformer_forward.2} parent=0 // loop_pre_header
    _
  $region3: #{transformer_forward.2} parent=0 // loop_header
    %s21 = sphi 0, %s25
    %p22 = scmp.ge.s32.totalorder %s21, 6
    %s28 = sphi 0, %s40
    %s29 = sphi 0, %s36
    %s30 = sphi 0, %s28
    %s31 = sphi 0, %s29
    %s32 = sphi 0, %s30
    %s33 = sphi 0, %s31
    %s43 = sphi 0, %s45
    %s46 = sphi 0, %s43
    %s47 = sphi 0, %s46
    %s63 = sphi 0, %s47
    %s67 = sphi 0, %s67
    %s69 = sphi 0, %s67
    %s70 = sphi 0, %s69
    %s84 = sphi 0, %s70
    %s88 = sphi 0, %s88
    %s90 = sphi 0, %s88
    %s91 = sphi 0, %s90
    %s105 = sphi 0, %s91
    %s111 = sphi 0, %s113
    %s114 = sphi 0, %s111
    %s115 = sphi 0, %s114
    %s131 = sphi 0, %s115
    %s137 = sphi 0, %s139
    %s140 = sphi 0, %s137
    %s141 = sphi 0, %s140
    %s157 = sphi 0, %s141
    %s163 = sphi 0, %s165
    %s166 = sphi 0, %s163
    %s167 = sphi 0, %s166
    %s183 = sphi 0, %s167
    %s189 = sphi 0, %s191
    %s192 = sphi 0, %s189
    %s193 = sphi 0, %s192
    %s209 = sphi 0, %s193
    %s215 = sphi 0, %s217
    %s218 = sphi 0, %s215
    %s219 = sphi 0, %s218
    %s235 = sphi 0, %s219
    %s241 = sphi 0, %s243
    %s244 = sphi 0, %s241
    %s245 = sphi 0, %s244
    %s261 = sphi 0, %s245
    %s267 = sphi 0, %s269
    %s270 = sphi 0, %s267
    %s271 = sphi 0, %s270
    %s287 = sphi 0, %s271
    %s293 = sphi 0, %s295
    %s296 = sphi 0, %s293
    %s297 = sphi 0, %s296
    %s313 = sphi 0, %s297
    %s319 = sphi 0, %s321
    %s322 = sphi 0, %s319
    %s323 = sphi 0, %s322
    %s339 = sphi 0, %s323
    %s345 = sphi 0, %s347
    %s348 = sphi 0, %s345
    %s349 = sphi 0, %s348
    %s365 = sphi 0, %s349
    %s371 = sphi 0, %s373
    %s374 = sphi 0, %s371
    %s375 = sphi 0, %s374
    %s391 = sphi 0, %s375
    %s397 = sphi 0, %s399
    %s400 = sphi 0, %s397
    %s401 = sphi 0, %s400
    %s417 = sphi 0, %s401
    %s423 = sphi 0, %s425
    %s426 = sphi 0, %s423
    %s427 = sphi 0, %s426
    %s443 = sphi 0, %s427
  $region4: #{transformer_forward.2} parent=0 // loop_header_branch
    %24 = sbr.rel (%p22) target = $region8
  $region5: #{transformer_forward.2} parent=0 // loop_body
    %s26 = ssub.s32 %s21, 1
    %s27 = ssub.s32 %s21, 2
    %s34 = sadd.s32 1, %s29
    %p35 = scmp.ge.s32.totalorder %s34, 2
    %s36 = scalar_select %p35, 0, %s34
    %s37 = sadd.s32 1, %s28
    %s38 = scalar_select %p35, %s37, %s28
    %p39 = scmp.ge.s32.totalorder %s38, 2
    %s40 = scalar_select %p39, 0, %s38
    %s41 = ssub.s32 %s28, %s40
    %p42 = scmp.eq.s32.totalorder %s41, 0
    %s44 = sadd.s32 %s43, 1
    %s45 = scalar_select %p42, %s43, %s44
    %p48 = pneg %p42
    %p49 = scmp.eq.s32.totalorder %s21, 3
    %p50 = por %p48, %p49
    %p51 = scmp.ne.s32.totalorder %s43, %s46
    %p52 = scmp.eq.s32.totalorder %s21, 0
    %p53 = por %p51, %p52
    %p54 = scmp.ne.s32.totalorder %s43, %s46
    %p55 = scmp.eq.s32.totalorder %s26, 3
    %p56 = por %p54, %p55
    %p57 = scmp.ne.s32.totalorder %s46, %s47
    %p58 = scmp.eq.s32.totalorder %s26, 0
    %p59 = por %p57, %p58
    %p60 = scmp.ne.s32.totalorder %s46, %s47
    %p61 = scmp.eq.s32.totalorder %s27, 3
    %p62 = por %p60, %p61
    %p64 = scmp.ne.s32.totalorder %s47, %s63
    %p65 = scmp.eq.s32.totalorder %s27, 0
    %p66 = por %p64, %p65
    %s68 = sadd.s32 %s67, 1
    %p71 = scmp.eq.s32.totalorder %s21, 3
    %p72 = scmp.ne.s32.totalorder %s67, %s69
    %p73 = scmp.eq.s32.totalorder %s21, 0
    %p74 = por %p72, %p73
    %p75 = scmp.ne.s32.totalorder %s67, %s69
    %p76 = scmp.eq.s32.totalorder %s26, 3
    %p77 = por %p75, %p76
    %p78 = scmp.ne.s32.totalorder %s69, %s70
    %p79 = scmp.eq.s32.totalorder %s26, 0
    %p80 = por %p78, %p79
    %p81 = scmp.ne.s32.totalorder %s69, %s70
    %p82 = scmp.eq.s32.totalorder %s27, 3
    %p83 = por %p81, %p82
    %p85 = scmp.ne.s32.totalorder %s70, %s84
    %p86 = scmp.eq.s32.totalorder %s27, 0
    %p87 = por %p85, %p86
    %s89 = sadd.s32 %s88, 1
    %p92 = scmp.eq.s32.totalorder %s21, 3
    %p93 = scmp.ne.s32.totalorder %s88, %s90
    %p94 = scmp.eq.s32.totalorder %s21, 0
    %p95 = por %p93, %p94
    %p96 = scmp.ne.s32.totalorder %s88, %s90
    %p97 = scmp.eq.s32.totalorder %s26, 3
    %p98 = por %p96, %p97
    %p99 = scmp.ne.s32.totalorder %s90, %s91
    %p100 = scmp.eq.s32.totalorder %s26, 0
    %p101 = por %p99, %p100
    %p102 = scmp.ne.s32.totalorder %s90, %s91
    %p103 = scmp.eq.s32.totalorder %s27, 3
    %p104 = por %p102, %p103
    %p106 = scmp.ne.s32.totalorder %s91, %s105
    %p107 = scmp.eq.s32.totalorder %s27, 0
    %p108 = por %p106, %p107
    %s109 = ssub.s32 %s29, %s36
    %p110 = scmp.eq.s32.totalorder %s109, 0
    %s112 = sadd.s32 %s111, 1
    %s113 = scalar_select %p110, %s111, %s112
    %p116 = pneg %p110
    %p117 = scmp.eq.s32.totalorder %s21, 3
    %p118 = por %p116, %p117
    %p119 = scmp.ne.s32.totalorder %s111, %s114
    %p120 = scmp.eq.s32.totalorder %s21, 0
    %p121 = por %p119, %p120
    %p122 = scmp.ne.s32.totalorder %s111, %s114
    %p123 = scmp.eq.s32.totalorder %s26, 3
    %p124 = por %p122, %p123
    %p125 = scmp.ne.s32.totalorder %s114, %s115
    %p126 = scmp.eq.s32.totalorder %s26, 0
    %p127 = por %p125, %p126
    %p128 = scmp.ne.s32.totalorder %s114, %s115
    %p129 = scmp.eq.s32.totalorder %s27, 3
    %p130 = por %p128, %p129
    %p132 = scmp.ne.s32.totalorder %s115, %s131
    %p133 = scmp.eq.s32.totalorder %s27, 0
    %p134 = por %p132, %p133
    %s135 = ssub.s32 %s29, %s36
    %p136 = scmp.eq.s32.totalorder %s135, 0
    %s138 = sadd.s32 %s137, 1
    %s139 = scalar_select %p136, %s137, %s138
    %p142 = pneg %p136
    %p143 = scmp.eq.s32.totalorder %s21, 3
    %p144 = por %p142, %p143
    %p145 = scmp.ne.s32.totalorder %s137, %s140
    %p146 = scmp.eq.s32.totalorder %s21, 0
    %p147 = por %p145, %p146
    %p148 = scmp.ne.s32.totalorder %s137, %s140
    %p149 = scmp.eq.s32.totalorder %s26, 3
    %p150 = por %p148, %p149
    %p151 = scmp.ne.s32.totalorder %s140, %s141
    %p152 = scmp.eq.s32.totalorder %s26, 0
    %p153 = por %p151, %p152
    %p154 = scmp.ne.s32.totalorder %s140, %s141
    %p155 = scmp.eq.s32.totalorder %s27, 3
    %p156 = por %p154, %p155
    %p158 = scmp.ne.s32.totalorder %s141, %s157
    %p159 = scmp.eq.s32.totalorder %s27, 0
    %p160 = por %p158, %p159
    %s161 = ssub.s32 %s29, %s36
    %p162 = scmp.eq.s32.totalorder %s161, 0
    %s164 = sadd.s32 %s163, 1
    %s165 = scalar_select %p162, %s163, %s164
    %p168 = pneg %p162
    %p169 = scmp.eq.s32.totalorder %s21, 3
    %p170 = por %p168, %p169
    %p171 = scmp.ne.s32.totalorder %s163, %s166
    %p172 = scmp.eq.s32.totalorder %s21, 0
    %p173 = por %p171, %p172
    %p174 = scmp.ne.s32.totalorder %s163, %s166
    %p175 = scmp.eq.s32.totalorder %s26, 3
    %p176 = por %p174, %p175
    %p177 = scmp.ne.s32.totalorder %s166, %s167
    %p178 = scmp.eq.s32.totalorder %s26, 0
    %p179 = por %p177, %p178
    %p180 = scmp.ne.s32.totalorder %s166, %s167
    %p181 = scmp.eq.s32.totalorder %s27, 3
    %p182 = por %p180, %p181
    %p184 = scmp.ne.s32.totalorder %s167, %s183
    %p185 = scmp.eq.s32.totalorder %s27, 0
    %p186 = por %p184, %p185
    %s187 = ssub.s32 %s29, %s36
    %p188 = scmp.eq.s32.totalorder %s187, 0
    %s190 = sadd.s32 %s189, 1
    %s191 = scalar_select %p188, %s189, %s190
    %p194 = pneg %p188
    %p195 = scmp.eq.s32.totalorder %s21, 3
    %p196 = por %p194, %p195
    %p197 = scmp.ne.s32.totalorder %s189, %s192
    %p198 = scmp.eq.s32.totalorder %s21, 0
    %p199 = por %p197, %p198
    %p200 = scmp.ne.s32.totalorder %s189, %s192
    %p201 = scmp.eq.s32.totalorder %s26, 3
    %p202 = por %p200, %p201
    %p203 = scmp.ne.s32.totalorder %s192, %s193
    %p204 = scmp.eq.s32.totalorder %s26, 0
    %p205 = por %p203, %p204
    %p206 = scmp.ne.s32.totalorder %s192, %s193
    %p207 = scmp.eq.s32.totalorder %s27, 3
    %p208 = por %p206, %p207
    %p210 = scmp.ne.s32.totalorder %s193, %s209
    %p211 = scmp.eq.s32.totalorder %s27, 0
    %p212 = por %p210, %p211
    %s213 = ssub.s32 %s29, %s36
    %p214 = scmp.eq.s32.totalorder %s213, 0
    %s216 = sadd.s32 %s215, 1
    %s217 = scalar_select %p214, %s215, %s216
    %p220 = pneg %p214
    %p221 = scmp.eq.s32.totalorder %s21, 3
    %p222 = por %p220, %p221
    %p223 = scmp.ne.s32.totalorder %s215, %s218
    %p224 = scmp.eq.s32.totalorder %s21, 0
    %p225 = por %p223, %p224
    %p226 = scmp.ne.s32.totalorder %s215, %s218
    %p227 = scmp.eq.s32.totalorder %s26, 3
    %p228 = por %p226, %p227
    %p229 = scmp.ne.s32.totalorder %s218, %s219
    %p230 = scmp.eq.s32.totalorder %s26, 0
    %p231 = por %p229, %p230
    %p232 = scmp.ne.s32.totalorder %s218, %s219
    %p233 = scmp.eq.s32.totalorder %s27, 3
    %p234 = por %p232, %p233
    %p236 = scmp.ne.s32.totalorder %s219, %s235
    %p237 = scmp.eq.s32.totalorder %s27, 0
    %p238 = por %p236, %p237
    %s239 = ssub.s32 %s29, %s36
    %p240 = scmp.eq.s32.totalorder %s239, 0
    %s242 = sadd.s32 %s241, 1
    %s243 = scalar_select %p240, %s241, %s242
    %p246 = pneg %p240
    %p247 = scmp.eq.s32.totalorder %s21, 3
    %p248 = por %p246, %p247
    %p249 = scmp.ne.s32.totalorder %s241, %s244
    %p250 = scmp.eq.s32.totalorder %s21, 0
    %p251 = por %p249, %p250
    %p252 = scmp.ne.s32.totalorder %s241, %s244
    %p253 = scmp.eq.s32.totalorder %s26, 3
    %p254 = por %p252, %p253
    %p255 = scmp.ne.s32.totalorder %s244, %s245
    %p256 = scmp.eq.s32.totalorder %s26, 0
    %p257 = por %p255, %p256
    %p258 = scmp.ne.s32.totalorder %s244, %s245
    %p259 = scmp.eq.s32.totalorder %s27, 3
    %p260 = por %p258, %p259
    %p262 = scmp.ne.s32.totalorder %s245, %s261
    %p263 = scmp.eq.s32.totalorder %s27, 0
    %p264 = por %p262, %p263
    %s265 = ssub.s32 %s29, %s36
    %p266 = scmp.eq.s32.totalorder %s265, 0
    %s268 = sadd.s32 %s267, 1
    %s269 = scalar_select %p266, %s267, %s268
    %p272 = pneg %p266
    %p273 = scmp.eq.s32.totalorder %s21, 3
    %p274 = por %p272, %p273
    %p275 = scmp.ne.s32.totalorder %s267, %s270
    %p276 = scmp.eq.s32.totalorder %s21, 0
    %p277 = por %p275, %p276
    %p278 = scmp.ne.s32.totalorder %s267, %s270
    %p279 = scmp.eq.s32.totalorder %s26, 3
    %p280 = por %p278, %p279
    %p281 = scmp.ne.s32.totalorder %s270, %s271
    %p282 = scmp.eq.s32.totalorder %s26, 0
    %p283 = por %p281, %p282
    %p284 = scmp.ne.s32.totalorder %s270, %s271
    %p285 = scmp.eq.s32.totalorder %s27, 3
    %p286 = por %p284, %p285
    %p288 = scmp.ne.s32.totalorder %s271, %s287
    %p289 = scmp.eq.s32.totalorder %s27, 0
    %p290 = por %p288, %p289
    %s291 = ssub.s32 %s29, %s36
    %p292 = scmp.eq.s32.totalorder %s291, 0
    %s294 = sadd.s32 %s293, 1
    %s295 = scalar_select %p292, %s293, %s294
    %p298 = pneg %p292
    %p299 = scmp.eq.s32.totalorder %s21, 3
    %p300 = por %p298, %p299
    %p301 = scmp.ne.s32.totalorder %s293, %s296
    %p302 = scmp.eq.s32.totalorder %s21, 0
    %p303 = por %p301, %p302
    %p304 = scmp.ne.s32.totalorder %s293, %s296
    %p305 = scmp.eq.s32.totalorder %s26, 3
    %p306 = por %p304, %p305
    %p307 = scmp.ne.s32.totalorder %s296, %s297
    %p308 = scmp.eq.s32.totalorder %s26, 0
    %p309 = por %p307, %p308
    %p310 = scmp.ne.s32.totalorder %s296, %s297
    %p311 = scmp.eq.s32.totalorder %s27, 3
    %p312 = por %p310, %p311
    %p314 = scmp.ne.s32.totalorder %s297, %s313
    %p315 = scmp.eq.s32.totalorder %s27, 0
    %p316 = por %p314, %p315
    %s317 = ssub.s32 %s29, %s36
    %p318 = scmp.eq.s32.totalorder %s317, 0
    %s320 = sadd.s32 %s319, 1
    %s321 = scalar_select %p318, %s319, %s320
    %p324 = pneg %p318
    %p325 = scmp.eq.s32.totalorder %s21, 3
    %p326 = por %p324, %p325
    %p327 = scmp.ne.s32.totalorder %s319, %s322
    %p328 = scmp.eq.s32.totalorder %s21, 0
    %p329 = por %p327, %p328
    %p330 = scmp.ne.s32.totalorder %s319, %s322
    %p331 = scmp.eq.s32.totalorder %s26, 3
    %p332 = por %p330, %p331
    %p333 = scmp.ne.s32.totalorder %s322, %s323
    %p334 = scmp.eq.s32.totalorder %s26, 0
    %p335 = por %p333, %p334
    %p336 = scmp.ne.s32.totalorder %s322, %s323
    %p337 = scmp.eq.s32.totalorder %s27, 3
    %p338 = por %p336, %p337
    %p340 = scmp.ne.s32.totalorder %s323, %s339
    %p341 = scmp.eq.s32.totalorder %s27, 0
    %p342 = por %p340, %p341
    %s343 = ssub.s32 %s29, %s36
    %p344 = scmp.eq.s32.totalorder %s343, 0
    %s346 = sadd.s32 %s345, 1
    %s347 = scalar_select %p344, %s345, %s346
    %p350 = pneg %p344
    %p351 = scmp.eq.s32.totalorder %s21, 3
    %p352 = por %p350, %p351
    %p353 = scmp.ne.s32.totalorder %s345, %s348
    %p354 = scmp.eq.s32.totalorder %s21, 0
    %p355 = por %p353, %p354
    %p356 = scmp.ne.s32.totalorder %s345, %s348
    %p357 = scmp.eq.s32.totalorder %s26, 3
    %p358 = por %p356, %p357
    %p359 = scmp.ne.s32.totalorder %s348, %s349
    %p360 = scmp.eq.s32.totalorder %s26, 0
    %p361 = por %p359, %p360
    %p362 = scmp.ne.s32.totalorder %s348, %s349
    %p363 = scmp.eq.s32.totalorder %s27, 3
    %p364 = por %p362, %p363
    %p366 = scmp.ne.s32.totalorder %s349, %s365
    %p367 = scmp.eq.s32.totalorder %s27, 0
    %p368 = por %p366, %p367
    %s369 = ssub.s32 %s29, %s36
    %p370 = scmp.eq.s32.totalorder %s369, 0
    %s372 = sadd.s32 %s371, 1
    %s373 = scalar_select %p370, %s371, %s372
    %p376 = pneg %p370
    %p377 = scmp.eq.s32.totalorder %s21, 3
    %p378 = por %p376, %p377
    %p379 = scmp.ne.s32.totalorder %s371, %s374
    %p380 = scmp.eq.s32.totalorder %s21, 0
    %p381 = por %p379, %p380
    %p382 = scmp.ne.s32.totalorder %s371, %s374
    %p383 = scmp.eq.s32.totalorder %s26, 3
    %p384 = por %p382, %p383
    %p385 = scmp.ne.s32.totalorder %s374, %s375
    %p386 = scmp.eq.s32.totalorder %s26, 0
    %p387 = por %p385, %p386
    %p388 = scmp.ne.s32.totalorder %s374, %s375
    %p389 = scmp.eq.s32.totalorder %s27, 3
    %p390 = por %p388, %p389
    %p392 = scmp.ne.s32.totalorder %s375, %s391
    %p393 = scmp.eq.s32.totalorder %s27, 0
    %p394 = por %p392, %p393
    %s395 = ssub.s32 %s29, %s36
    %p396 = scmp.eq.s32.totalorder %s395, 0
    %s398 = sadd.s32 %s397, 1
    %s399 = scalar_select %p396, %s397, %s398
    %p402 = pneg %p396
    %p403 = scmp.eq.s32.totalorder %s21, 3
    %p404 = por %p402, %p403
    %p405 = scmp.ne.s32.totalorder %s397, %s400
    %p406 = scmp.eq.s32.totalorder %s21, 0
    %p407 = por %p405, %p406
    %p408 = scmp.ne.s32.totalorder %s397, %s400
    %p409 = scmp.eq.s32.totalorder %s26, 3
    %p410 = por %p408, %p409
    %p411 = scmp.ne.s32.totalorder %s400, %s401
    %p412 = scmp.eq.s32.totalorder %s26, 0
    %p413 = por %p411, %p412
    %p414 = scmp.ne.s32.totalorder %s400, %s401
    %p415 = scmp.eq.s32.totalorder %s27, 3
    %p416 = por %p414, %p415
    %p418 = scmp.ne.s32.totalorder %s401, %s417
    %p419 = scmp.eq.s32.totalorder %s27, 0
    %p420 = por %p418, %p419
    %s421 = ssub.s32 %s28, %s40
    %p422 = scmp.eq.s32.totalorder %s421, 0
    %s424 = sadd.s32 %s423, 1
    %s425 = scalar_select %p422, %s423, %s424
    %p428 = pneg %p422
    %p429 = scmp.eq.s32.totalorder %s21, 3
    %p430 = por %p428, %p429
    %p431 = scmp.ne.s32.totalorder %s423, %s426
    %p432 = scmp.eq.s32.totalorder %s21, 0
    %p433 = por %p431, %p432
    %p434 = scmp.ne.s32.totalorder %s423, %s426
    %p435 = scmp.eq.s32.totalorder %s26, 3
    %p436 = por %p434, %p435
    %p437 = scmp.ne.s32.totalorder %s426, %s427
    %p438 = scmp.eq.s32.totalorder %s26, 0
    %p439 = por %p437, %p438
    %p440 = scmp.ne.s32.totalorder %s426, %s427
    %p441 = scmp.eq.s32.totalorder %s27, 3
    %p442 = por %p440, %p441
    %p444 = scmp.ne.s32.totalorder %s427, %s443
    %p445 = scmp.eq.s32.totalorder %s27, 0
    %p446 = por %p444, %p445
    %p447 = scmp.le.s32.totalorder 1, %s21
    %p448 = scmp.lt.s32.totalorder %s21, 5
    %p449 = pnand %p447, %p448
    %p450 = pneg %p449
    // Predicated region
    $region9: #{transformer_forward.2} parent=5 // pred_check
      _
    $region10: #{transformer_forward.2} parent=5 // pred_check_branch
      %452 = sbr.rel (%p449) target = $region12
    $region11: #{transformer_forward.2} parent=5 // pred_region
      %s453 = ssub.s32 %s21, 1
      // Predicated region
      $region13: #{transformer_forward.2} parent=11 // pred_check
        %p454 = pneg %p80
      $region14: #{transformer_forward.2} parent=11 // pred_check_branch
        %456 = sbr.rel (%p454) target = $region16
      $region15: #{transformer_forward.2} parent=11 // pred_region
        _
      $region16: #{transformer_forward.2} parent=11 // pred_fallthru
        _
      // Predicated region
      $region17: #{transformer_forward.2} parent=11 // pred_check
        %p457 = pneg %p101
      $region18: #{transformer_forward.2} parent=11 // pred_check_branch
        %459 = sbr.rel (%p457) target = $region20
      $region19: #{transformer_forward.2} parent=11 // pred_region
        _
      $region20: #{transformer_forward.2} parent=11 // pred_fallthru
        _
    $region12: #{transformer_forward.2} parent=5 // pred_fallthru
      _
    %p460 = scmp.lt.s32.totalorder %s21, 4
    // Predicated region
    $region21: #{transformer_forward.2} parent=5 // pred_check
      %p461 = pneg %p460
    $region22: #{transformer_forward.2} parent=5 // pred_check_branch
      %463 = sbr.rel (%p461) target = $region24
    $region23: #{transformer_forward.2} parent=5 // pred_region
      // Predicated region
      $region25: #{transformer_forward.2} parent=23 // pred_check
        %p464 = pneg %p53
      $region26: #{transformer_forward.2} parent=23 // pred_check_branch
        %466 = sbr.rel (%p464) target = $region28
      $region27: #{transformer_forward.2} parent=23 // pred_region
        %p467 = scmp.lt.s32.totalorder %s28, 1
        %s468 = scalar_select %p467, %s28, 1
        %s469 = smul.addr %s468, 8
        %s470 = scalar_lea.vmem %s0, %s469
      $region28: #{transformer_forward.2} parent=23 // pred_fallthru
        _
      // Predicated region
      $region29: #{transformer_forward.2} parent=23 // pred_check
        %p471 = pneg %p121
      $region30: #{transformer_forward.2} parent=23 // pred_check_branch
        %473 = sbr.rel (%p471) target = $region32
      $region31: #{transformer_forward.2} parent=23 // pred_region
        %p474 = scmp.lt.s32.totalorder %s29, 1
        %s475 = scalar_select %p474, %s29, 1
        %s476 = smul.addr %s475, 4
        %s477 = smul.addr %s476, 4
        %s478 = scalar_lea.vmem %s3, %s477
      $region32: #{transformer_forward.2} parent=23 // pred_fallthru
        _
      // Predicated region
      $region33: #{transformer_forward.2} parent=23 // pred_check
        %p479 = pneg %p147
      $region34: #{transformer_forward.2} parent=23 // pred_check_branch
        %481 = sbr.rel (%p479) target = $region36
      $region35: #{transformer_forward.2} parent=23 // pred_region
        %p482 = scmp.lt.s32.totalorder %s29, 1
        %s483 = scalar_select %p482, %s29, 1
        %s484 = scalar_lea.vmem %s4, %s483
      $region36: #{transformer_forward.2} parent=23 // pred_fallthru
        _
      // Predicated region
      $region37: #{transformer_forward.2} parent=23 // pred_check
        %p485 = pneg %p173
      $region38: #{transformer_forward.2} parent=23 // pred_check_branch
        %487 = sbr.rel (%p485) target = $region40
      $region39: #{transformer_forward.2} parent=23 // pred_region
        %p488 = scmp.lt.s32.totalorder %s29, 1
        %s489 = scalar_select %p488, %s29, 1
        %s490 = smul.addr %s489, 4
        %s491 = smul.addr %s490, 4
        %s492 = scalar_lea.vmem %s5, %s491
      $region40: #{transformer_forward.2} parent=23 // pred_fallthru
        _
      // Predicated region
      $region41: #{transformer_forward.2} parent=23 // pred_check
        %p493 = pneg %p199
      $region42: #{transformer_forward.2} parent=23 // pred_check_branch
        %495 = sbr.rel (%p493) target = $region44
      $region43: #{transformer_forward.2} parent=23 // pred_region
        %p496 = scmp.lt.s32.totalorder %s29, 1
        %s497 = scalar_select %p496, %s29, 1
        %s498 = scalar_lea.vmem %s6, %s497
      $region44: #{transformer_forward.2} parent=23 // pred_fallthru
        _
      // Predicated region
      $region45: #{transformer_forward.2} parent=23 // pred_check
        %p499 = pneg %p225
      $region46: #{transformer_forward.2} parent=23 // pred_check_branch
        %501 = sbr.rel (%p499) target = $region48
      $region47: #{transformer_forward.2} parent=23 // pred_region
        %p502 = scmp.lt.s32.totalorder %s29, 1
        %s503 = scalar_select %p502, %s29, 1
        %s504 = scalar_lea.vmem %s7, %s503
      $region48: #{transformer_forward.2} parent=23 // pred_fallthru
        _
      // Predicated region
      $region49: #{transformer_forward.2} parent=23 // pred_check
        %p505 = pneg %p251
      $region50: #{transformer_forward.2} parent=23 // pred_check_branch
        %507 = sbr.rel (%p505) target = $region52
      $region51: #{transformer_forward.2} parent=23 // pred_region
        %p508 = scmp.lt.s32.totalorder %s29, 1
        %s509 = scalar_select %p508, %s29, 1
        %s510 = scalar_lea.vmem %s8, %s509
      $region52: #{transformer_forward.2} parent=23 // pred_fallthru
        _
      // Predicated region
      $region53: #{transformer_forward.2} parent=23 // pred_check
        %p511 = pneg %p277
      $region54: #{transformer_forward.2} parent=23 // pred_check_branch
        %513 = sbr.rel (%p511) target = $region56
      $region55: #{transformer_forward.2} parent=23 // pred_region
        %p514 = scmp.lt.s32.totalorder %s29, 1
        %s515 = scalar_select %p514, %s29, 1
        %s516 = smul.addr %s515, 4
        %s517 = smul.addr %s516, 4
        %s518 = scalar_lea.vmem %s9, %s517
      $region56: #{transformer_forward.2} parent=23 // pred_fallthru
        _
      // Predicated region
      $region57: #{transformer_forward.2} parent=23 // pred_check
        %p519 = pneg %p303
      $region58: #{transformer_forward.2} parent=23 // pred_check_branch
        %521 = sbr.rel (%p519) target = $region60
      $region59: #{transformer_forward.2} parent=23 // pred_region
        %p522 = scmp.lt.s32.totalorder %s29, 1
        %s523 = scalar_select %p522, %s29, 1
        %s524 = scalar_lea.vmem %s10, %s523
      $region60: #{transformer_forward.2} parent=23 // pred_fallthru
        _
      // Predicated region
      $region61: #{transformer_forward.2} parent=23 // pred_check
        %p525 = pneg %p329
      $region62: #{transformer_forward.2} parent=23 // pred_check_branch
        %527 = sbr.rel (%p525) target = $region64
      $region63: #{transformer_forward.2} parent=23 // pred_region
        %p528 = scmp.lt.s32.totalorder %s29, 1
        %s529 = scalar_select %p528, %s29, 1
        %s530 = smul.addr %s529, 8
        %s531 = smul.addr %s530, 4
        %s532 = scalar_lea.vmem %s11, %s531
      $region64: #{transformer_forward.2} parent=23 // pred_fallthru
        _
      // Predicated region
      $region65: #{transformer_forward.2} parent=23 // pred_check
        %p533 = pneg %p355
      $region66: #{transformer_forward.2} parent=23 // pred_check_branch
        %535 = sbr.rel (%p533) target = $region68
      $region67: #{transformer_forward.2} parent=23 // pred_region
        %p536 = scmp.lt.s32.totalorder %s29, 1
        %s537 = scalar_select %p536, %s29, 1
        %s538 = scalar_lea.vmem %s12, %s537
      $region68: #{transformer_forward.2} parent=23 // pred_fallthru
        _
      // Predicated region
      $region69: #{transformer_forward.2} parent=23 // pred_check
        %p539 = pneg %p381
      $region70: #{transformer_forward.2} parent=23 // pred_check_branch
        %541 = sbr.rel (%p539) target = $region72
      $region71: #{transformer_forward.2} parent=23 // pred_region
        %p542 = scmp.lt.s32.totalorder %s29, 1
        %s543 = scalar_select %p542, %s29, 1
        %s544 = scalar_lea.vmem %s13, %s543
      $region72: #{transformer_forward.2} parent=23 // pred_fallthru
        _
      // Predicated region
      $region73: #{transformer_forward.2} parent=23 // pred_check
        %p545 = pneg %p407
      $region74: #{transformer_forward.2} parent=23 // pred_check_branch
        %547 = sbr.rel (%p545) target = $region76
      $region75: #{transformer_forward.2} parent=23 // pred_region
        %p548 = scmp.lt.s32.totalorder %s29, 1
        %s549 = scalar_select %p548, %s29, 1
        %s550 = scalar_lea.vmem %s14, %s549
      $region76: #{transformer_forward.2} parent=23 // pred_fallthru
        _
    $region24: #{transformer_forward.2} parent=5 // pred_fallthru
      _
    %p551 = scmp.le.s32.totalorder 1, %s21
    %p552 = scmp.lt.s32.totalorder %s21, 5
    %p553 = pnand %p551, %p552
    %p554 = pneg %p553
    // Predicated region
    $region77: #{transformer_forward.2} parent=5 // pred_check
      _
    $region78: #{transformer_forward.2} parent=5 // pred_check_branch
      %556 = sbr.rel (%p553) target = $region80
    $region79: #{transformer_forward.2} parent=5 // pred_region
      %s557 = ssub.s32 %s21, 1
      %p558 = scmp.lt.s32.totalorder %s30, 1
      %s559 = scalar_select %p558, %s30, 1
      %s560 = smul.addr %s559, 8
      %s561 = scalar_lea.vmem %s0, %s560
      %p562 = pneg %p59
      %p563 = pneg %p56
      %p564 = pneg %p80
      %p565 = pneg %p77
      %p566 = pneg %p101
      %p567 = pneg %p98
      %p568 = scmp.lt.s32.totalorder %s31, 1
      %s569 = scalar_select %p568, %s31, 1
      %s570 = smul.addr %s569, 4
      %s571 = smul.addr %s570, 4
      %s572 = scalar_lea.vmem %s3, %s571
      %p573 = pneg %p127
      %p574 = pneg %p124
      %p575 = scmp.lt.s32.totalorder %s31, 1
      %s576 = scalar_select %p575, %s31, 1
      %s577 = scalar_lea.vmem %s4, %s576
      %p578 = pneg %p153
      %p579 = pneg %p150
      %p580 = scmp.lt.s32.totalorder %s31, 1
      %s581 = scalar_select %p580, %s31, 1
      %s582 = smul.addr %s581, 4
      %s583 = smul.addr %s582, 4
      %s584 = scalar_lea.vmem %s5, %s583
      %p585 = pneg %p179
      %p586 = pneg %p176
      %p587 = scmp.lt.s32.totalorder %s31, 1
      %s588 = scalar_select %p587, %s31, 1
      %s589 = scalar_lea.vmem %s6, %s588
      %p590 = pneg %p205
      %p591 = pneg %p202
      %p592 = scmp.lt.s32.totalorder %s31, 1
      %s593 = scalar_select %p592, %s31, 1
      %s594 = scalar_lea.vmem %s7, %s593
      %p595 = pneg %p231
      %p596 = pneg %p228
      %p597 = scmp.lt.s32.totalorder %s31, 1
      %s598 = scalar_select %p597, %s31, 1
      %s599 = scalar_lea.vmem %s8, %s598
      %p600 = pneg %p257
      %p601 = pneg %p254
      %p602 = scmp.lt.s32.totalorder %s31, 1
      %s603 = scalar_select %p602, %s31, 1
      %s604 = smul.addr %s603, 4
      %s605 = smul.addr %s604, 4
      %s606 = scalar_lea.vmem %s9, %s605
      %p607 = pneg %p283
      %p608 = pneg %p280
      %p609 = scmp.lt.s32.totalorder %s31, 1
      %s610 = scalar_select %p609, %s31, 1
      %s611 = scalar_lea.vmem %s10, %s610
      %p612 = pneg %p309
      %p613 = pneg %p306
      %p614 = scmp.lt.s32.totalorder %s31, 1
      %s615 = scalar_select %p614, %s31, 1
      %s616 = smul.addr %s615, 8
      %s617 = smul.addr %s616, 4
      %s618 = scalar_lea.vmem %s11, %s617
      %p619 = pneg %p335
      %p620 = pneg %p332
      %p621 = scmp.lt.s32.totalorder %s31, 1
      %s622 = scalar_select %p621, %s31, 1
      %s623 = scalar_lea.vmem %s12, %s622
      %p624 = pneg %p361
      %p625 = pneg %p358
      %p626 = scmp.lt.s32.totalorder %s31, 1
      %s627 = scalar_select %p626, %s31, 1
      %s628 = scalar_lea.vmem %s13, %s627
      %p629 = pneg %p387
      %p630 = pneg %p384
      %p631 = scmp.lt.s32.totalorder %s31, 1
      %s632 = scalar_select %p631, %s31, 1
      %s633 = scalar_lea.vmem %s14, %s632
      %p634 = pneg %p413
      %p635 = pneg %p410
      %p636 = pneg %p439
      %p637 = pneg %p436
      %p638 = scmp.lt.s32.totalorder %s30, 1
      %s639 = scalar_select %p638, %s30, 1
      %s640 = smul.addr %s639, 4
      %s641 = scalar_lea.vmem %s15, %s640
      %p642 = scmp.lt.s32.totalorder %s30, 1
      %s643 = scalar_select %p642, %s30, 1
      %s644 = smul.addr %s643, 8
      %s645 = scalar_lea.vmem %s0, %s644
      %p646 = scmp.lt.s32.totalorder %s31, 1
      %s647 = scalar_select %p646, %s31, 1
      %s648 = smul.addr %s647, 4
      %s649 = smul.addr %s648, 4
      %s650 = scalar_lea.vmem %s3, %s649
      %p651 = scmp.lt.s32.totalorder %s31, 1
      %s652 = scalar_select %p651, %s31, 1
      %s653 = scalar_lea.vmem %s4, %s652
      %p654 = scmp.lt.s32.totalorder %s31, 1
      %s655 = scalar_select %p654, %s31, 1
      %s656 = smul.addr %s655, 4
      %s657 = smul.addr %s656, 4
      %s658 = scalar_lea.vmem %s5, %s657
      %p659 = scmp.lt.s32.totalorder %s31, 1
      %s660 = scalar_select %p659, %s31, 1
      %s661 = scalar_lea.vmem %s6, %s660
      %p662 = scmp.lt.s32.totalorder %s31, 1
      %s663 = scalar_select %p662, %s31, 1
      %s664 = scalar_lea.vmem %s7, %s663
      %p665 = scmp.lt.s32.totalorder %s31, 1
      %s666 = scalar_select %p665, %s31, 1
      %s667 = scalar_lea.vmem %s8, %s666
      %p668 = scmp.lt.s32.totalorder %s31, 1
      %s669 = scalar_select %p668, %s31, 1
      %s670 = smul.addr %s669, 4
      %s671 = smul.addr %s670, 4
      %s672 = scalar_lea.vmem %s9, %s671
      %p673 = scmp.lt.s32.totalorder %s31, 1
      %s674 = scalar_select %p673, %s31, 1
      %s675 = scalar_lea.vmem %s10, %s674
      %p676 = scmp.lt.s32.totalorder %s31, 1
      %s677 = scalar_select %p676, %s31, 1
      %s678 = smul.addr %s677, 8
      %s679 = smul.addr %s678, 4
      %s680 = scalar_lea.vmem %s11, %s679
      %p681 = scmp.lt.s32.totalorder %s31, 1
      %s682 = scalar_select %p681, %s31, 1
      %s683 = scalar_lea.vmem %s12, %s682
      %p684 = scmp.lt.s32.totalorder %s31, 1
      %s685 = scalar_select %p684, %s31, 1
      %s686 = scalar_lea.vmem %s13, %s685
      %p687 = scmp.lt.s32.totalorder %s31, 1
      %s688 = scalar_select %p687, %s31, 1
      %s689 = scalar_lea.vmem %s14, %s688
      %p690 = scmp.lt.s32.totalorder %s30, 1
      %s691 = scalar_select %p690, %s30, 1
      %s692 = smul.addr %s691, 4
      %s693 = scalar_lea.vmem %s15, %s692
      %p695 = scmp.eq.s32.totalorder %s31, 0
      // Predicated region
      $region81: #{transformer_forward.2} parent=79 // pred_check
        %p696 = pneg %p695
      $region82: #{transformer_forward.2} parent=79 // pred_check_branch
        %698 = sbr.rel (%p696) target = $region84
      $region83: #{transformer_forward.2} parent=79 // pred_region
        %v699 = vld [vmem:[%s645] sm:$0xff]
        %v700 = vmul.f32 %v699, 5.656854
        %v701 = vld [vmem:[%s1] sm:$0xff]
        %v702 = vadd.f32 %v700, %v701
        %vm703 = vcmask 261120
        %704 = vst.msk [vmem:[#allocation2] sm:$0xff] %vm703, %v702
      $region84: #{transformer_forward.2} parent=79 // pred_fallthru
        _
      %v705 = vld [vmem:[#allocation2] sm:$0xff]
      %v706 = vld [vmem:[%s2] sm:$0xff]
      %v707 = vpack.c.bf16 %v705, %v705
      %v708 = vld [vmem:[%s650] sm:$0xf]
      %v709 = vld [vmem:[%s650 + $0x4] sm:$0xf]
      %v710 = vld [vmem:[%s650 + $0x8] sm:$0xf]
      %v711 = vld [vmem:[%s650 + $0xc] sm:$0xf]
      %v712 = vld [vmem:[%s653] sm:$0x1]
      %v714 = vlaneseq
      %v715 = vshrl.u32 %v714, 7
      %v716 = vsub.s32 0, %v715
      %v717 = vrot.slane %v712, %v716
      %v723 = vunpack.c.l.b16 %v708
      %v724 = vunpack.c.l.b16 %v709
      %v725 = vunpack.c.l.b16 %v710
      %v726 = vunpack.c.l.b16 %v711
      %v727 = vpack.c.b16 %v724, %v723
      %v728 = vpack.c.b16 %v726, %v725
      %vm731 = vcmask 261120
      %v733 = vsel %vm731, %v707, 0
      %735 = vmatprep.subr.bf16.mxu0 0
      %736 = vmatpush1.bf16.msra.mxu0 %v727
      %737 = vmatprep.subr.bf16.mxu0 0
      %738 = vmatpush1.bf16.msra.mxu0 %v728
      %739 = vmatprep.subr.bf16.mxu0 0
      %740 = vmatpush1.bf16.msra.mxu0 0
      %741 = vmatprep.subr.bf16.mxu0 0
      %742 = vmatpush1.bf16.msra.mxu0 0
      %743 = vmatprep.subr.bf16.mxu0 0
      %744 = vmatpush1.bf16.msra.mxu0 0
      %745 = vmatprep.subr.bf16.mxu0 0
      %746 = vmatpush1.bf16.msra.mxu0 0
      %747 = vmatprep.subr.bf16.mxu0 0
      %748 = vmatpush1.bf16.msra.mxu0 0
      %749 = vmatprep.subr.bf16.mxu0 0
      %750 = vmatpush1.bf16.msra.mxu0 0
      %751 = vmatprep.subr.bf16.mxu0 0
      %752 = vmatpush1.bf16.msra.mxu0 0
      %753 = vmatprep.subr.bf16.mxu0 0
      %754 = vmatpush1.bf16.msra.mxu0 0
      %755 = vmatprep.subr.bf16.mxu0 0
      %756 = vmatpush1.bf16.msra.mxu0 0
      %757 = vmatprep.subr.bf16.mxu0 0
      %758 = vmatpush1.bf16.msra.mxu0 0
      %759 = vmatprep.subr.bf16.mxu0 0
      %760 = vmatpush1.bf16.msra.mxu0 0
      %761 = vmatprep.subr.bf16.mxu0 0
      %762 = vmatpush1.bf16.msra.mxu0 0
      %763 = vmatprep.subr.bf16.mxu0 0
      %764 = vmatpush1.bf16.msra.mxu0 0
      %765 = vmatprep.subr.bf16.mxu0 0
      %766 = vmatpush1.bf16.msra.mxu0 0
      %767 = vmatprep.mubr.bf16.mxu0 0
      %768 = vmatmul.mubr.bf16.gmra.mrb[0].mxu0 %v733
      %v769 = vpop.f32.mrb[0].mxu0
      %v770 = vadd.f32 %v717, %v769
      %v771 = vpop.f32.mrb[0].mxu0
      %v772 = vpop.f32.mrb[0].mxu0
      %v773 = vpop.f32.mrb[0].mxu0
      %774 = vdwg.mxu0
      %v775 = vmul.f32 %v770, 0.25
      %v776 = vpack.c.bf16 %v770, %v770
      %v777 = vpack.c.bf16 %v775, %v775
      %779 = vrot.lane.b32.xlu0 %v776, 96
      %v780 = vpop.permute.xlu0 %779
      %vm781 = vcmask 130048
      %v783 = vsel %vm781, %v777, 0
      %v786 = vsel %vm781, %v780, 0
      %788 = vmatprep.subr.bf16.mxu0 0
      %789 = vmatpush1.bf16.xpose.msra.mxu0 %v786
      %790 = vmatprep.subr.bf16.mxu0 0
      %791 = vmatpush1.bf16.xpose.msra.mxu0 0
      %792 = vmatprep.subr.bf16.mxu0 0
      %793 = vmatpush1.bf16.xpose.msra.mxu0 0
      %794 = vmatprep.subr.bf16.mxu0 0
      %795 = vmatpush1.bf16.xpose.msra.mxu0 0
      %796 = vmatprep.subr.bf16.mxu0 0
      %797 = vmatpush1.bf16.xpose.msra.mxu0 0
      %798 = vmatprep.subr.bf16.mxu0 0
      %799 = vmatpush1.bf16.xpose.msra.mxu0 0
      %800 = vmatprep.subr.bf16.mxu0 0
      %801 = vmatpush1.bf16.xpose.msra.mxu0 0
      %802 = vmatprep.subr.bf16.mxu0 0
      %803 = vmatpush1.bf16.xpose.msra.mxu0 0
      %804 = vmatprep.subr.bf16.mxu0 0
      %805 = vmatpush1.bf16.xpose.msra.mxu0 0
      %806 = vmatprep.subr.bf16.mxu0 0
      %807 = vmatpush1.bf16.xpose.msra.mxu0 0
      %808 = vmatprep.subr.bf16.mxu0 0
      %809 = vmatpush1.bf16.xpose.msra.mxu0 0
      %810 = vmatprep.subr.bf16.mxu0 0
      %811 = vmatpush1.bf16.xpose.msra.mxu0 0
      %812 = vmatprep.subr.bf16.mxu0 0
      %813 = vmatpush1.bf16.xpose.msra.mxu0 0
      %814 = vmatprep.subr.bf16.mxu0 0
      %815 = vmatpush1.bf16.xpose.msra.mxu0 0
      %816 = vmatprep.subr.bf16.mxu0 0
      %817 = vmatpush1.bf16.xpose.msra.mxu0 0
      %818 = vmatprep.subr.bf16.mxu0 0
      %819 = vmatpush1.bf16.xpose.msra.mxu0 0
      %820 = vmatprep.mubr.bf16.mxu0 0
      %821 = vmatmul.mubr.bf16.gmra.mrb[0].mxu0 %v783
      %v822 = vpop.f32.mrb[0].mxu0
      %v823 = vadd.f32 %v706, %v822
      %v824 = vpop.f32.mrb[0].mxu0
      %v825 = vpop.f32.mrb[0].mxu0
      %v826 = vpop.f32.mrb[0].mxu0
      %827 = vdwg.mxu0
      %vm828 = vcmask 64512
      %v829 = vsel %vm828, %v823, -inf
      %830 = vmax.xlane.f32.xlu0 %v829
      %v831 = vpop.xlane.xlu0 %830
      %v832 = vsub.f32 %v823, %v831
      %v833 = vmul.f32 %v832, 1.442695
      %v834 = vpow.pop %v833
      %v835 = vsel %vm828, %v834, 0.0
      %836 = vadd.xlane.f32.xlu0 %v835
      %v837 = vpop.xlane.xlu0 %836
      %v838 = vrcp.pop %v837
      %v839 = vmul.f32 %v834, %v838
      %v840 = vpack.c.bf16 %v839, %v839
      %841 = vrot.lane.b32.xlu0 %v776, 64
      %v842 = vpop.permute.xlu0 %841
      %v844 = vsel %vm828, %v840, 0
      %vm846 = vcmask 1043456
      %v848 = vsel %vm846, %v842, 0
      %850 = vmatprep.subr.bf16.mxu0 0
      %851 = vmatpush1.bf16.msra.mxu0 %v848
      %852 = vmatprep.subr.bf16.mxu0 0
      %853 = vmatpush1.bf16.msra.mxu0 0
      %854 = vmatprep.subr.bf16.mxu0 0
      %855 = vmatpush1.bf16.msra.mxu0 0
      %856 = vmatprep.subr.bf16.mxu0 0
      %857 = vmatpush1.bf16.msra.mxu0 0
      %858 = vmatprep.subr.bf16.mxu0 0
      %859 = vmatpush1.bf16.msra.mxu0 0
      %860 = vmatprep.subr.bf16.mxu0 0
      %861 = vmatpush1.bf16.msra.mxu0 0
      %862 = vmatprep.subr.bf16.mxu0 0
      %863 = vmatpush1.bf16.msra.mxu0 0
      %864 = vmatprep.subr.bf16.mxu0 0
      %865 = vmatpush1.bf16.msra.mxu0 0
      %866 = vmatprep.subr.bf16.mxu0 0
      %867 = vmatpush1.bf16.msra.mxu0 0
      %868 = vmatprep.subr.bf16.mxu0 0
      %869 = vmatpush1.bf16.msra.mxu0 0
      %870 = vmatprep.subr.bf16.mxu0 0
      %871 = vmatpush1.bf16.msra.mxu0 0
      %872 = vmatprep.subr.bf16.mxu0 0
      %873 = vmatpush1.bf16.msra.mxu0 0
      %874 = vmatprep.subr.bf16.mxu0 0
      %875 = vmatpush1.bf16.msra.mxu0 0
      %876 = vmatprep.subr.bf16.mxu0 0
      %877 = vmatpush1.bf16.msra.mxu0 0
      %878 = vmatprep.subr.bf16.mxu0 0
      %879 = vmatpush1.bf16.msra.mxu0 0
      %880 = vmatprep.subr.bf16.mxu0 0
      %881 = vmatpush1.bf16.msra.mxu0 0
      %882 = vmatprep.mubr.bf16.mxu0 0
      %883 = vmatmul.mubr.bf16.gmra.mrb[0].mxu0 %v844
      %v884 = vpop.f32.mrb[0].mxu0
      %v885 = vadd.f32 0.0, %v884
      %v886 = vpop.f32.mrb[0].mxu0
      %v887 = vpop.f32.mrb[0].mxu0
      %v888 = vpop.f32.mrb[0].mxu0
      %889 = vdwg.mxu0
      %891 = vrot.lane.b32.xlu0 %v777, 112
      %v892 = vpop.permute.xlu0 %891
      %893 = vrot.lane.b32.xlu0 %v776, 80
      %v894 = vpop.permute.xlu0 %893
      %v896 = vsel %vm781, %v892, 0
      %v899 = vsel %vm781, %v894, 0
      %901 = vmatprep.subr.bf16.mxu0 0
      %902 = vmatpush1.bf16.xpose.msra.mxu0 %v899
      %903 = vmatprep.subr.bf16.mxu0 0
      %904 = vmatpush1.bf16.xpose.msra.mxu0 0
      %905 = vmatprep.subr.bf16.mxu0 0
      %906 = vmatpush1.bf16.xpose.msra.mxu0 0
      %907 = vmatprep.subr.bf16.mxu0 0
      %908 = vmatpush1.bf16.xpose.msra.mxu0 0
      %909 = vmatprep.subr.bf16.mxu0 0
      %910 = vmatpush1.bf16.xpose.msra.mxu0 0
      %911 = vmatprep.subr.bf16.mxu0 0
      %912 = vmatpush1.bf16.xpose.msra.mxu0 0
      %913 = vmatprep.subr.bf16.mxu0 0
      %914 = vmatpush1.bf16.xpose.msra.mxu0 0
      %915 = vmatprep.subr.bf16.mxu0 0
      %916 = vmatpush1.bf16.xpose.msra.mxu0 0
      %917 = vmatprep.subr.bf16.mxu0 0
      %918 = vmatpush1.bf16.xpose.msra.mxu0 0
      %919 = vmatprep.subr.bf16.mxu0 0
      %920 = vmatpush1.bf16.xpose.msra.mxu0 0
      %921 = vmatprep.subr.bf16.mxu0 0
      %922 = vmatpush1.bf16.xpose.msra.mxu0 0
      %923 = vmatprep.subr.bf16.mxu0 0
      %924 = vmatpush1.bf16.xpose.msra.mxu0 0
      %925 = vmatprep.subr.bf16.mxu0 0
      %926 = vmatpush1.bf16.xpose.msra.mxu0 0
      %927 = vmatprep.subr.bf16.mxu0 0
      %928 = vmatpush1.bf16.xpose.msra.mxu0 0
      %929 = vmatprep.subr.bf16.mxu0 0
      %930 = vmatpush1.bf16.xpose.msra.mxu0 0
      %931 = vmatprep.subr.bf16.mxu0 0
      %932 = vmatpush1.bf16.xpose.msra.mxu0 0
      %933 = vmatprep.mubr.bf16.mxu0 0
      %934 = vmatmul.mubr.bf16.gmra.mrb[0].mxu0 %v896
      %v935 = vpop.f32.mrb[0].mxu0
      %v936 = vadd.f32 %v706, %v935
      %v937 = vpop.f32.mrb[0].mxu0
      %v938 = vpop.f32.mrb[0].mxu0
      %v939 = vpop.f32.mrb[0].mxu0
      %940 = vdwg.mxu0
      %v941 = vsel %vm828, %v936, -inf
      %942 = vmax.xlane.f32.xlu0 %v941
      %v943 = vpop.xlane.xlu0 %942
      %v944 = vsub.f32 %v936, %v943
      %v945 = vmul.f32 %v944, 1.442695
      %v946 = vpow.pop %v945
      %v947 = vsel %vm828, %v946, 0.0
      %948 = vadd.xlane.f32.xlu0 %v947
      %v949 = vpop.xlane.xlu0 %948
      %v950 = vrcp.pop %v949
      %v951 = vmul.f32 %v946, %v950
      %v952 = vpack.c.bf16 %v951, %v951
      %953 = vrot.lane.b32.xlu0 %v776, 48
      %v954 = vpop.permute.xlu0 %953
      %v956 = vsel %vm828, %v952, 0
      %v959 = vsel %vm846, %v954, 0
      %961 = vmatprep.subr.bf16.mxu0 0
      %962 = vmatpush1.bf16.msra.mxu0 %v959
      %963 = vmatprep.subr.bf16.mxu0 0
      %964 = vmatpush1.bf16.msra.mxu0 0
      %965 = vmatprep.subr.bf16.mxu0 0
      %966 = vmatpush1.bf16.msra.mxu0 0
      %967 = vmatprep.subr.bf16.mxu0 0
      %968 = vmatpush1.bf16.msra.mxu0 0
      %969 = vmatprep.subr.bf16.mxu0 0
      %970 = vmatpush1.bf16.msra.mxu0 0
      %971 = vmatprep.subr.bf16.mxu0 0
      %972 = vmatpush1.bf16.msra.mxu0 0
      %973 = vmatprep.subr.bf16.mxu0 0
      %974 = vmatpush1.bf16.msra.mxu0 0
      %975 = vmatprep.subr.bf16.mxu0 0
      %976 = vmatpush1.bf16.msra.mxu0 0
      %977 = vmatprep.subr.bf16.mxu0 0
      %978 = vmatpush1.bf16.msra.mxu0 0
      %979 = vmatprep.subr.bf16.mxu0 0
      %980 = vmatpush1.bf16.msra.mxu0 0
      %981 = vmatprep.subr.bf16.mxu0 0
      %982 = vmatpush1.bf16.msra.mxu0 0
      %983 = vmatprep.subr.bf16.mxu0 0
      %984 = vmatpush1.bf16.msra.mxu0 0
      %985 = vmatprep.subr.bf16.mxu0 0
      %986 = vmatpush1.bf16.msra.mxu0 0
      %987 = vmatprep.subr.bf16.mxu0 0
      %988 = vmatpush1.bf16.msra.mxu0 0
      %989 = vmatprep.subr.bf16.mxu0 0
      %990 = vmatpush1.bf16.msra.mxu0 0
      %991 = vmatprep.subr.bf16.mxu0 0
      %992 = vmatpush1.bf16.msra.mxu0 0
      %993 = vmatprep.mubr.bf16.mxu0 0
      %994 = vmatmul.mubr.bf16.gmra.mrb[0].mxu0 %v956
      %v995 = vpop.f32.mrb[0].mxu0
      %v996 = vadd.f32 0.0, %v995
      %v997 = vpop.f32.mrb[0].mxu0
      %v998 = vpop.f32.mrb[0].mxu0
      %v999 = vpop.f32.mrb[0].mxu0
      %1000 = vdwg.mxu0
      %1002 = vrot.lane.b32.xlu0 %v996, 16
      %v1003 = vpop.permute.xlu0 %1002
      %v1005 = vsel %vm781, %v885, %v1003
      %v1006 = vpack.c.bf16 %v1005, %v1005
      %v1007 = vld [vmem:[%s658] sm:$0xf]
      %v1008 = vld [vmem:[%s658 + $0x4] sm:$0xf]
      %v1009 = vld [vmem:[%s658 + $0x8] sm:$0xf]
      %v1010 = vld [vmem:[%s658 + $0xc] sm:$0xf]
      %v1011 = vld [vmem:[%s661] sm:$0x1]
      %v1013 = vlaneseq
      %v1014 = vshrl.u32 %v1013, 7
      %v1015 = vsub.s32 0, %v1014
      %v1016 = vrot.slane %v1011, %v1015
      %v1022 = vunpack.c.l.b16 %v1007
      %v1023 = vunpack.c.l.b16 %v1008
      %v1024 = vunpack.c.l.b16 %v1009
      %v1025 = vunpack.c.l.b16 %v1010
      %v1026 = vpack.c.b16 %v1023, %v1022
      %v1027 = vpack.c.b16 %v1025, %v1024
      %v1031 = vsel %vm731, %v1006, 0
      %1033 = vmatprep.subr.bf16.mxu0 0
      %1034 = vmatpush1.bf16.msra.mxu0 %v1026
      %1035 = vmatprep.subr.bf16.mxu0 0
      %1036 = vmatpush1.bf16.msra.mxu0 %v1027
      %1037 = vmatprep.subr.bf16.mxu0 0
      %1038 = vmatpush1.bf16.msra.mxu0 0
      %1039 = vmatprep.subr.bf16.mxu0 0
      %1040 = vmatpush1.bf16.msra.mxu0 0
      %1041 = vmatprep.subr.bf16.mxu0 0
      %1042 = vmatpush1.bf16.msra.mxu0 0
      %1043 = vmatprep.subr.bf16.mxu0 0
      %1044 = vmatpush1.bf16.msra.mxu0 0
      %1045 = vmatprep.subr.bf16.mxu0 0
      %1046 = vmatpush1.bf16.msra.mxu0 0
      %1047 = vmatprep.subr.bf16.mxu0 0
      %1048 = vmatpush1.bf16.msra.mxu0 0
      %1049 = vmatprep.subr.bf16.mxu0 0
      %1050 = vmatpush1.bf16.msra.mxu0 0
      %1051 = vmatprep.subr.bf16.mxu0 0
      %1052 = vmatpush1.bf16.msra.mxu0 0
      %1053 = vmatprep.subr.bf16.mxu0 0
      %1054 = vmatpush1.bf16.msra.mxu0 0
      %1055 = vmatprep.subr.bf16.mxu0 0
      %1056 = vmatpush1.bf16.msra.mxu0 0
      %1057 = vmatprep.subr.bf16.mxu0 0
      %1058 = vmatpush1.bf16.msra.mxu0 0
      %1059 = vmatprep.subr.bf16.mxu0 0
      %1060 = vmatpush1.bf16.msra.mxu0 0
      %1061 = vmatprep.subr.bf16.mxu0 0
      %1062 = vmatpush1.bf16.msra.mxu0 0
      %1063 = vmatprep.subr.bf16.mxu0 0
      %1064 = vmatpush1.bf16.msra.mxu0 0
      %1065 = vmatprep.mubr.bf16.mxu0 0
      %1066 = vmatmul.mubr.bf16.gmra.mrb[0].mxu0 %v1031
      %v1067 = vpop.f32.mrb[0].mxu0
      %v1068 = vadd.f32 %v1016, %v1067
      %v1069 = vpop.f32.mrb[0].mxu0
      %v1070 = vpop.f32.mrb[0].mxu0
      %v1071 = vpop.f32.mrb[0].mxu0
      %1072 = vdwg.mxu0
      %v1073 = vadd.f32 %v705, %v1068
      %v1074 = vld [vmem:[%s664] sm:$0x1]
      %v1075 = vld [vmem:[%s667] sm:$0x1]
      %v1076 = vsel %vm731, %v1073, 0.0
      %1077 = vadd.xlane.f32.xlu0 %v1076
      %v1078 = vpop.xlane.xlu0 %1077
      %v1079 = vrcp.pop 32.0
      %v1080 = vmul.f32 %v1078, %v1079
      %v1081 = vsub.f32 %v1073, %v1080
      %v1082 = vmul.f32 %v1081, %v1081
      %v1083 = vsel %vm731, %v1082, 0.0
      %1084 = vadd.xlane.f32.xlu0 %v1083
      %v1085 = vpop.xlane.xlu0 %1084
      %v1086 = vmul.f32 %v1085, %v1079
      %v1087 = vadd.f32 %v1086, 1e-05
      %v1088 = vrsqrt.pop %v1087
      %v1089 = vmul.f32 %v1081, %v1088
      %v1091 = vlaneseq
      %v1092 = vshrl.u32 %v1091, 7
      %v1093 = vsub.s32 0, %v1092
      %v1094 = vrot.slane %v1074, %v1093
      %v1096 = vmul.f32 %v1089, %v1094
      %v1098 = vlaneseq
      %v1099 = vshrl.u32 %v1098, 7
      %v1100 = vsub.s32 0, %v1099
      %v1101 = vrot.slane %v1075, %v1100
      %v1103 = vadd.f32 %v1096, %v1101
      %v1104 = vpack.c.bf16 %v1103, %v1103
      %v1105 = vld [vmem:[%s672] sm:$0xf]
      %v1106 = vld [vmem:[%s672 + $0x4] sm:$0xf]
      %v1107 = vld [vmem:[%s672 + $0x8] sm:$0xf]
      %v1108 = vld [vmem:[%s672 + $0xc] sm:$0xf]
      %v1109 = vld [vmem:[%s675] sm:$0x1]
      %v1111 = vlaneseq
      %v1112 = vshrl.u32 %v1111, 7
      %v1113 = vsub.s32 0, %v1112
      %v1114 = vrot.slane %v1109, %v1113
      %v1120 = vunpack.c.l.b16 %v1105
      %v1121 = vunpack.c.l.b16 %v1106
      %v1122 = vunpack.c.l.b16 %v1107
      %v1123 = vunpack.c.l.b16 %v1108
      %v1124 = vpack.c.b16 %v1121, %v1120
      %v1125 = vpack.c.b16 %v1123, %v1122
      %v1129 = vsel %vm731, %v1104, 0
      %1131 = vmatprep.subr.bf16.mxu0 0
      %1132 = vmatpush1.bf16.msra.mxu0 %v1124
      %1133 = vmatprep.subr.bf16.mxu0 0
      %1134 = vmatpush1.bf16.msra.mxu0 %v1125
      %1135 = vmatprep.subr.bf16.mxu0 0
      %1136 = vmatpush1.bf16.msra.mxu0 0
      %1137 = vmatprep.subr.bf16.mxu0 0
      %1138 = vmatpush1.bf16.msra.mxu0 0
      %1139 = vmatprep.subr.bf16.mxu0 0
      %1140 = vmatpush1.bf16.msra.mxu0 0
      %1141 = vmatprep.subr.bf16.mxu0 0
      %1142 = vmatpush1.bf16.msra.mxu0 0
      %1143 = vmatprep.subr.bf16.mxu0 0
      %1144 = vmatpush1.bf16.msra.mxu0 0
      %1145 = vmatprep.subr.bf16.mxu0 0
      %1146 = vmatpush1.bf16.msra.mxu0 0
      %1147 = vmatprep.subr.bf16.mxu0 0
      %1148 = vmatpush1.bf16.msra.mxu0 0
      %1149 = vmatprep.subr.bf16.mxu0 0
      %1150 = vmatpush1.bf16.msra.mxu0 0
      %1151 = vmatprep.subr.bf16.mxu0 0
      %1152 = vmatpush1.bf16.msra.mxu0 0
      %1153 = vmatprep.subr.bf16.mxu0 0
      %1154 = vmatpush1.bf16.msra.mxu0 0
      %1155 = vmatprep.subr.bf16.mxu0 0
      %1156 = vmatpush1.bf16.msra.mxu0 0
      %1157 = vmatprep.subr.bf16.mxu0 0
      %1158 = vmatpush1.bf16.msra.mxu0 0
      %1159 = vmatprep.subr.bf16.mxu0 0
      %1160 = vmatpush1.bf16.msra.mxu0 0
      %1161 = vmatprep.subr.bf16.mxu0 0
      %1162 = vmatpush1.bf16.msra.mxu0 0
      %1163 = vmatprep.mubr.bf16.mxu0 0
      %1164 = vmatmul.mubr.bf16.gmra.mrb[0].mxu0 %v1129
      %v1165 = vpop.f32.mrb[0].mxu0
      %v1166 = vadd.f32 %v1114, %v1165
      %v1167 = vpop.f32.mrb[0].mxu0
      %v1168 = vpop.f32.mrb[0].mxu0
      %v1169 = vpop.f32.mrb[0].mxu0
      %1170 = vdwg.mxu0
      %v1171 = vmax.f32 %v1166, 0.0
      %v1172 = vpack.c.bf16 %v1171, %v1171
      %v1173 = vld [vmem:[%s680] sm:$0xf]
      %v1174 = vld [vmem:[%s680 + $0x4] sm:$0xf]
      %v1175 = vld [vmem:[%s680 + $0x8] sm:$0xf]
      %v1176 = vld [vmem:[%s680 + $0xc] sm:$0xf]
      %v1177 = vld [vmem:[%s680 + $0x10] sm:$0xf]
      %v1178 = vld [vmem:[%s680 + $0x14] sm:$0xf]
      %v1179 = vld [vmem:[%s680 + $0x18] sm:$0xf]
      %v1180 = vld [vmem:[%s680 + $0x1c] sm:$0xf]
      %v1181 = vld [vmem:[%s683] sm:$0x1]
      %v1183 = vlaneseq
      %v1184 = vshrl.u32 %v1183, 7
      %v1185 = vsub.s32 0, %v1184
      %v1186 = vrot.slane %v1181, %v1185
      %v1196 = vunpack.c.l.b16 %v1173
      %v1197 = vunpack.c.l.b16 %v1174
      %v1198 = vunpack.c.l.b16 %v1175
      %v1199 = vunpack.c.l.b16 %v1176
      %v1200 = vunpack.c.l.b16 %v1177
      %v1201 = vunpack.c.l.b16 %v1178
      %v1202 = vunpack.c.l.b16 %v1179
      %v1203 = vunpack.c.l.b16 %v1180
      %v1204 = vpack.c.b16 %v1197, %v1196
      %v1205 = vpack.c.b16 %v1199, %v1198
      %v1206 = vpack.c.b16 %v1201, %v1200
      %v1207 = vpack.c.b16 %v1203, %v1202
      %vm1212 = vcmask 523264
      %v1214 = vsel %vm1212, %v1172, 0
      %1216 = vmatprep.subr.bf16.mxu0 0
      %1217 = vmatpush1.bf16.msra.mxu0 %v1204
      %1218 = vmatprep.subr.bf16.mxu0 0
      %1219 = vmatpush1.bf16.msra.mxu0 %v1205
      %1220 = vmatprep.subr.bf16.mxu0 0
      %1221 = vmatpush1.bf16.msra.mxu0 %v1206
      %1222 = vmatprep.subr.bf16.mxu0 0
      %1223 = vmatpush1.bf16.msra.mxu0 %v1207
      %1224 = vmatprep.subr.bf16.mxu0 0
      %1225 = vmatpush1.bf16.msra.mxu0 0
      %1226 = vmatprep.subr.bf16.mxu0 0
      %1227 = vmatpush1.bf16.msra.mxu0 0
      %1228 = vmatprep.subr.bf16.mxu0 0
      %1229 = vmatpush1.bf16.msra.mxu0 0
      %1230 = vmatprep.subr.bf16.mxu0 0
      %1231 = vmatpush1.bf16.msra.mxu0 0
      %1232 = vmatprep.subr.bf16.mxu0 0
      %1233 = vmatpush1.bf16.msra.mxu0 0
      %1234 = vmatprep.subr.bf16.mxu0 0
      %1235 = vmatpush1.bf16.msra.mxu0 0
      %1236 = vmatprep.subr.bf16.mxu0 0
      %1237 = vmatpush1.bf16.msra.mxu0 0
      %1238 = vmatprep.subr.bf16.mxu0 0
      %1239 = vmatpush1.bf16.msra.mxu0 0
      %1240 = vmatprep.subr.bf16.mxu0 0
      %1241 = vmatpush1.bf16.msra.mxu0 0
      %1242 = vmatprep.subr.bf16.mxu0 0
      %1243 = vmatpush1.bf16.msra.mxu0 0
      %1244 = vmatprep.subr.bf16.mxu0 0
      %1245 = vmatpush1.bf16.msra.mxu0 0
      %1246 = vmatprep.subr.bf16.mxu0 0
      %1247 = vmatpush1.bf16.msra.mxu0 0
      %1248 = vmatprep.mubr.bf16.mxu0 0
      %1249 = vmatmul.mubr.bf16.gmra.mrb[0].mxu0 %v1214
      %v1250 = vpop.f32.mrb[0].mxu0
      %v1251 = vadd.f32 %v1186, %v1250
      %v1252 = vpop.f32.mrb[0].mxu0
      %v1253 = vpop.f32.mrb[0].mxu0
      %v1254 = vpop.f32.mrb[0].mxu0
      %1255 = vdwg.mxu0
      %v1256 = vadd.f32 %v1103, %v1251
      %v1257 = vld [vmem:[%s686] sm:$0x1]
      %v1258 = vld [vmem:[%s689] sm:$0x1]
      %v1259 = vsel %vm731, %v1256, 0.0
      %1260 = vadd.xlane.f32.xlu0 %v1259
      %v1261 = vpop.xlane.xlu0 %1260
      %v1262 = vmul.f32 %v1261, %v1079
      %v1263 = vsub.f32 %v1256, %v1262
      %v1264 = vmul.f32 %v1263, %v1263
      %v1265 = vsel %vm731, %v1264, 0.0
      %1266 = vadd.xlane.f32.xlu0 %v1265
      %v1267 = vpop.xlane.xlu0 %1266
      %v1268 = vmul.f32 %v1267, %v1079
      %v1269 = vadd.f32 %v1268, 1e-05
      %v1270 = vrsqrt.pop %v1269
      %v1271 = vmul.f32 %v1263, %v1270
      %v1273 = vlaneseq
      %v1274 = vshrl.u32 %v1273, 7
      %v1275 = vsub.s32 0, %v1274
      %v1276 = vrot.slane %v1257, %v1275
      %v1278 = vmul.f32 %v1271, %v1276
      %v1280 = vlaneseq
      %v1281 = vshrl.u32 %v1280, 7
      %v1282 = vsub.s32 0, %v1281
      %v1283 = vrot.slane %v1258, %v1282
      %v1285 = vadd.f32 %v1278, %v1283
      %1286 = vst.msk [vmem:[#allocation2] sm:$0xff] %vm731, %v1285
      %p1287 = scmp.eq.s32.totalorder %s31, 1
      // Predicated region
      $region85: #{transformer_forward.2} parent=79 // pred_check
        %p1288 = pneg %p1287
      $region86: #{transformer_forward.2} parent=79 // pred_check_branch
        %1290 = sbr.rel (%p1288) target = $region88
      $region87: #{transformer_forward.2} parent=79 // pred_region
        %v1291 = vpack.c.bf16 %v1285, %v1285
        %vm1292 = vcmask 257024
        %1293 = vst.msk [vmem:[%s693] sm:$0xf] %vm1292, %v1291
      $region88: #{transformer_forward.2} parent=79 // pred_fallthru
        _
      %p1294 = scmp.lt.s32.totalorder %s30, 1
      %s1295 = scalar_select %p1294, %s30, 1
      %s1296 = smul.addr %s1295, 4
      %s1297 = scalar_lea.vmem %s15, %s1296
      // Predicated region
      $region89: #{transformer_forward.2} parent=79 // pred_check
        %p1298 = pneg %p436
      $region90: #{transformer_forward.2} parent=79 // pred_check_branch
        %1300 = sbr.rel (%p1298) target = $region92
      $region91: #{transformer_forward.2} parent=79 // pred_region
        _
      $region92: #{transformer_forward.2} parent=79 // pred_fallthru
        _
    $region80: #{transformer_forward.2} parent=5 // pred_fallthru
      _
    %p1301 = scmp.le.s32.totalorder 2, %s21
    // Predicated region
    $region93: #{transformer_forward.2} parent=5 // pred_check
      %p1302 = pneg %p1301
    $region94: #{transformer_forward.2} parent=5 // pred_check_branch
      %1304 = sbr.rel (%p1302) target = $region96
    $region95: #{transformer_forward.2} parent=5 // pred_region
      %s1305 = ssub.s32 %s21, 2
      // Predicated region
      $region97: #{transformer_forward.2} parent=95 // pred_check
        %p1306 = pneg %p442
      $region98: #{transformer_forward.2} parent=95 // pred_check_branch
        %1308 = sbr.rel (%p1306) target = $region100
      $region99: #{transformer_forward.2} parent=95 // pred_region
        %p1309 = scmp.lt.s32.totalorder %s32, 1
        %s1310 = scalar_select %p1309, %s32, 1
        %s1311 = smul.addr %s1310, 4
        %s1312 = scalar_lea.vmem %s15, %s1311
      $region100: #{transformer_forward.2} parent=95 // pred_fallthru
        _
    $region96: #{transformer_forward.2} parent=5 // pred_fallthru
      _
  $region6: #{transformer_forward.2} parent=0 // loop_footer
    %s25 = sadd.s32 1, %s21
  $region7: #{transformer_forward.2} parent=0 // loop_footer_branch
    %20 = sbr.rel target = $region3
  $region8: #{transformer_forward.2} parent=0 // loop_exit
    _

</llo_original>
